<compile_context>
chip_gen: v6e
topology: v6e:2x2x1
jax: 0.10.0
libtpu: 0.0.40
codegen_flags: <defaults>
</compile_context>

<pallas_src>
import math

import jax
import jax.numpy as jnp
from jax.experimental import pallas as pl
from jax.experimental.pallas import tpu as pltpu

# ----------------------------- synthetic config -----------------------------
VOCAB = 100
HIDDEN = 32
N_HEADS = 4
HEAD_DIM = HIDDEN // N_HEADS
N_LAYERS = 2
INTERMEDIATE = 64
MAX_POS = 16
TYPE_VOCAB = 2
NUM_LABELS = 5
NPAD = 128            # lane-dense padded classifier width (sliced to NUM_LABELS outside)
LN_EPS = 1e-12
BATCH = 2
SEQ = 8


# ------------------------------ kernel helpers ------------------------------
def _layernorm(x, g, b):
    mean = jnp.mean(x, axis=-1, keepdims=True)
    var = jnp.mean(jnp.square(x - mean), axis=-1, keepdims=True)
    return (x - mean) * jax.lax.rsqrt(var + LN_EPS) * g + b


def _gelu(x):
    # TODO(synk): tanh-approx GELU; exact erf GELU differs by <1e-3 per activation.
    c = jnp.float32(math.sqrt(2.0 / math.pi))
    return 0.5 * x * (1.0 + jnp.tanh(c * (x + 0.044715 * x * x * x)))


# ------------------------------- fused kernel -------------------------------
def _fused_model_kernel(
    emb_ref, mask_ref, vecs_ref,
    wqkv_ref, bqkv_ref, wo_ref, lvec_ref,
    w1_ref, b1_ref, w2_ref,
    pw_ref, cw_ref, cb_ref,
    out_ref,
):
    # One grid point == one batch element (grid axis is "parallel").
    vecs = vecs_ref[...]                      # [3, H]: emb_ln_g, emb_ln_b, pool_b
    lvecs = lvec_ref[...]                     # [L, 6, H]: bo, ln1_g, ln1_b, b2, ln2_g, ln2_b
    mask = mask_ref[0]                        # [1, S] additive mask (broadcasts over query rows)

    # Embedding LayerNorm.
    x = _layernorm(emb_ref[0], vecs[0:1], vecs[1:2])        # [S, H] f32

    for l in range(N_LAYERS):                 # static unroll
        lv = lvecs[l]                         # [6, H]

        # ---- fused QKV projection (attention scale pre-folded into Q cols) ----
        qkv = jnp.dot(x.astype(jnp.bfloat16), wqkv_ref[l],
                      preferred_element_type=jnp.float32) + bqkv_ref[l]
        qkv = qkv.astype(jnp.bfloat16)        # [S, 3H], stays in registers

        # ---- multi-head self-attention; per-head context collected in registers ----
        ctx_heads = []
        for h in range(N_HEADS):              # static unroll
            o = h * HEAD_DIM
            qh = qkv[:, o:o + HEAD_DIM]                                    # [S, hd]
            kh = qkv[:, HIDDEN + o:HIDDEN + o + HEAD_DIM]                  # [S, hd]
            vh = qkv[:, 2 * HIDDEN + o:2 * HIDDEN + o + HEAD_DIM]          # [S, hd]
            s = jnp.einsum("qd,kd->qk", qh, kh,
                           preferred_element_type=jnp.float32) + mask      # [S, S]
            s = s - jnp.max(s, axis=-1, keepdims=True)
            p = jnp.exp(s)
            # Exact divide (not approx reciprocal): negligible cost at 8x8.
            p = p / jnp.sum(p, axis=-1, keepdims=True)
            ctx_heads.append(jnp.dot(p.astype(jnp.bfloat16), vh,
                                     preferred_element_type=jnp.float32))  # [S, hd]
        ctx = jnp.concatenate(ctx_heads, axis=-1)                          # [S, H] f32

        # ---- attention output projection + residual + LN ----
        attn = jnp.dot(ctx.astype(jnp.bfloat16), wo_ref[l],
                       preferred_element_type=jnp.float32) + lv[0:1]
        x = _layernorm(attn + x, lv[1:2], lv[2:3])

        # ---- FFN + residual + LN ----
        h1 = jnp.dot(x.astype(jnp.bfloat16), w1_ref[l],
                     preferred_element_type=jnp.float32) + b1_ref[l]
        h1 = _gelu(h1)
        h2 = jnp.dot(h1.astype(jnp.bfloat16), w2_ref[l],
                     preferred_element_type=jnp.float32) + lv[3:4]
        x = _layernorm(h2 + x, lv[4:5], lv[5:6])

    # ---- pooler + classifier on the full row block; CLS row selected in-register ----
    pooled = jnp.tanh(jnp.dot(x.astype(jnp.bfloat16), pw_ref[...],
                              preferred_element_type=jnp.float32) + vecs[2:3])
    # TODO(synk): dropout(p=0.5) is identity in inference mode; stochastic masking not applied.
    logits = jnp.dot(pooled.astype(jnp.bfloat16), cw_ref[...],
                     preferred_element_type=jnp.float32) + cb_ref[...]     # [S, 128]
    out_ref[...] = logits[0:1, :].reshape(1, 1, NPAD).astype(out_ref.dtype)


def _full_block_spec(shape):
    n = len(shape)
    return pl.BlockSpec(shape, lambda b, n=n: (0,) * n)


# -------------------------------- forward pass -------------------------------
@jax.jit
def transformer_model_forward(params, input_ids, attention_mask, token_type_ids):
    B, S = input_ids.shape
    if token_type_ids is None:
        token_type_ids = jnp.zeros_like(input_ids)

    # Embedding gathers are XLA glue (no clean Pallas gather at this size).
    we = jnp.take(params["word_emb"], input_ids, axis=0)               # [B, S, H]
    te = jnp.take(params["type_emb"], token_type_ids, axis=0)          # [B, S, H]
    pe = params["pos_emb"][:S][None, :, :]                             # [1, S, H]
    emb = we + te + pe                                                 # [B, S, H]

    # Additive attention mask, kept narrow as [B, 1, S]; broadcast happens in-kernel.
    # (A fully masked row would yield a uniform distribution, not NaN; the CLS
    #  position is always unmasked here.)
    mask_add = ((1.0 - attention_mask.astype(jnp.float32))
                * jnp.float32(-1e9))[:, None, :]                       # [B, 1, S]

    args = (
        emb, mask_add, params["small_vecs"],
        params["wqkv"], params["bqkv"], params["wo"], params["layer_vecs"],
        params["w1"], params["b1"], params["w2"],
        params["pool_w"], params["cls_w"], params["cls_b"],
    )

    in_specs = [
        pl.BlockSpec((1, S, HIDDEN), lambda b: (b, 0, 0)),             # embeddings, per batch
        pl.BlockSpec((1, 1, S), lambda b: (b, 0, 0)),                  # mask, per batch
    ] + [_full_block_spec(a.shape) for a in args[2:]]                  # weights, resident

    logits_pad = pl.pallas_call(
        _fused_model_kernel,
        out_shape=jax.ShapeDtypeStruct((B, 1, NPAD), jnp.float32),
        grid=(B,),
        in_specs=in_specs,
        out_specs=pl.BlockSpec((1, 1, NPAD), lambda b: (b, 0, 0)),
        compiler_params=pltpu.CompilerParams(dimension_semantics=("parallel",)),
    )(*args)
    # TODO(synk): at real BERT dims the weights should be layer-streamed via a
    # layer grid axis instead of being fully VMEM-resident.
    return logits_pad.reshape(B, NPAD)[:, :NUM_LABELS]


# ------------------------------ parameter init ------------------------------
def init_params(key):
    ks = jax.random.split(key, 3 + 6 * N_LAYERS + 2)
    ki = iter(ks)

    def w(shape):
        return jax.random.normal(next(ki), shape, jnp.float32) * 0.02

    att_scale = 1.0 / math.sqrt(HEAD_DIM)
    ones_h = jnp.ones((HIDDEN,), jnp.float32)
    zeros_h = jnp.zeros((HIDDEN,), jnp.float32)

    params = {
        "word_emb": w((VOCAB, HIDDEN)),
        "pos_emb": w((MAX_POS, HIDDEN)),
        "type_emb": w((TYPE_VOCAB, HIDDEN)),
        # rows: emb_ln_gamma, emb_ln_beta, pooler_bias
        "small_vecs": jnp.stack([ones_h, zeros_h, zeros_h]),           # [3, H]
    }

    wqkv, wo, w1, w2, lvecs = [], [], [], [], []
    for _ in range(N_LAYERS):
        wq, wk, wv = w((HIDDEN, HIDDEN)), w((HIDDEN, HIDDEN)), w((HIDDEN, HIDDEN))
        # 1/sqrt(head_dim) attention scale folded into the Q projection columns.
        wqkv.append(jnp.concatenate([wq * att_scale, wk, wv], axis=1)) # [H, 3H]
        wo.append(w((HIDDEN, HIDDEN)))
        w1.append(w((HIDDEN, INTERMEDIATE)))
        w2.append(w((INTERMEDIATE, HIDDEN)))
        # rows: bo, ln1_g, ln1_b, b2, ln2_g, ln2_b
        lvecs.append(jnp.stack([zeros_h, ones_h, zeros_h, zeros_h, ones_h, zeros_h]))

    # QKV bias (zeros here); its Q slice must carry the same folded scale.
    bqkv = jnp.zeros((N_LAYERS, 1, 3 * HIDDEN), jnp.float32)
    bqkv = bqkv.at[:, :, :HIDDEN].multiply(att_scale)

    params.update({
        "wqkv": jnp.stack(wqkv).astype(jnp.bfloat16),                  # [L, H, 3H]
        "bqkv": bqkv,                                                  # [L, 1, 3H]
        "wo": jnp.stack(wo).astype(jnp.bfloat16),                      # [L, H, H]
        "layer_vecs": jnp.stack(lvecs),                                # [L, 6, H]
        "w1": jnp.stack(w1).astype(jnp.bfloat16),                      # [L, H, I]
        "b1": jnp.zeros((N_LAYERS, 1, INTERMEDIATE), jnp.float32),     # [L, 1, I]
        "w2": jnp.stack(w2).astype(jnp.bfloat16),                      # [L, I, H]
    })

    pool_w = w((HIDDEN, HIDDEN))
    cls_w = w((HIDDEN, NUM_LABELS))
    cls_w_pad = jnp.zeros((HIDDEN, NPAD), jnp.float32).at[:, :NUM_LABELS].set(cls_w)
    params.update({
        "pool_w": pool_w.astype(jnp.bfloat16),                         # [H, H]
        "cls_w": cls_w_pad.astype(jnp.bfloat16),                       # [H, 128] padded
        "cls_b": jnp.zeros((1, NPAD), jnp.float32),                    # [1, 128]
    })
    return params


# ------------------------------------ main -----------------------------------
if __name__ == "__main__":
    key = jax.random.PRNGKey(0)
    pkey, ikey = jax.random.split(key)
    params = init_params(pkey)

    input_ids = jax.random.randint(ikey, (BATCH, SEQ), 0, VOCAB, dtype=jnp.int32)
    attention_mask = jnp.ones((BATCH, SEQ), dtype=jnp.int32)
    attention_mask = attention_mask.at[1, SEQ - 2:].set(0)             # exercise padding mask
    token_type_ids = jnp.zeros((BATCH, SEQ), dtype=jnp.int32)

    logits = transformer_model_forward(params, input_ids, attention_mask, token_type_ids)
    logits = jax.block_until_ready(logits)

    assert logits.shape == (BATCH, NUM_LABELS), logits.shape
    assert bool(jnp.all(jnp.isfinite(logits)))
    print("KERNEL_OK")
</pallas_src>

<mosaic_0001>
module attributes {stable_mosaic.version = 11 : i64} {
  func.func @_fused_model_kernel(%arg0: i32, %arg1: memref<1x8x32xf32, #tpu.memory_space<vmem>>, %arg2: memref<1x1x8xf32, #tpu.memory_space<vmem>>, %arg3: memref<3x32xf32, #tpu.memory_space<vmem>>, %arg4: memref<2x32x96xbf16, #tpu.memory_space<vmem>>, %arg5: memref<2x1x96xf32, #tpu.memory_space<vmem>>, %arg6: memref<2x32x32xbf16, #tpu.memory_space<vmem>>, %arg7: memref<2x6x32xf32, #tpu.memory_space<vmem>>, %arg8: memref<2x32x64xbf16, #tpu.memory_space<vmem>>, %arg9: memref<2x1x64xf32, #tpu.memory_space<vmem>>, %arg10: memref<2x64x32xbf16, #tpu.memory_space<vmem>>, %arg11: memref<32x32xbf16, #tpu.memory_space<vmem>>, %arg12: memref<32x128xbf16, #tpu.memory_space<vmem>>, %arg13: memref<1x128xf32, #tpu.memory_space<vmem>>, %arg14: memref<1x1x128xf32, #tpu.memory_space<vmem>>) attributes {dimension_semantics = [#tpu.dimension_semantics<parallel>], iteration_bounds = array<i64: 2>, scalar_prefetch = 0 : i64, scratch_operands = 0 : i64, tpu.core_type = #tpu.core_type<tc>, window_params = [{transform_indices = @transform_0, window_bounds = array<i64: 1, 8, 32>}, {transform_indices = @transform_1, window_bounds = array<i64: 1, 1, 8>}, {pipeline_mode = #tpu.pipeline_mode<synchronous>, transform_indices = @transform_2, window_bounds = array<i64: 3, 32>}, {pipeline_mode = #tpu.pipeline_mode<synchronous>, transform_indices = @transform_3, window_bounds = array<i64: 2, 32, 96>}, {pipeline_mode = #tpu.pipeline_mode<synchronous>, transform_indices = @transform_4, window_bounds = array<i64: 2, 1, 96>}, {pipeline_mode = #tpu.pipeline_mode<synchronous>, transform_indices = @transform_5, window_bounds = array<i64: 2, 32, 32>}, {pipeline_mode = #tpu.pipeline_mode<synchronous>, transform_indices = @transform_6, window_bounds = array<i64: 2, 6, 32>}, {pipeline_mode = #tpu.pipeline_mode<synchronous>, transform_indices = @transform_7, window_bounds = array<i64: 2, 32, 64>}, {pipeline_mode = #tpu.pipeline_mode<synchronous>, transform_indices = @transform_8, window_bounds = array<i64: 2, 1, 64>}, {pipeline_mode = #tpu.pipeline_mode<synchronous>, transform_indices = @transform_9, window_bounds = array<i64: 2, 64, 32>}, {pipeline_mode = #tpu.pipeline_mode<synchronous>, transform_indices = @transform_10, window_bounds = array<i64: 32, 32>}, {pipeline_mode = #tpu.pipeline_mode<synchronous>, transform_indices = @transform_11, window_bounds = array<i64: 32, 128>}, {pipeline_mode = #tpu.pipeline_mode<synchronous>, transform_indices = @transform_12, window_bounds = array<i64: 1, 128>}, {transform_indices = @transform_13, window_bounds = array<i64: 1, 1, 128>}]} {
    %c0 = arith.constant 0 : index
    %c0_0 = arith.constant 0 : index
    %0 = vector.load %arg3[%c0, %c0_0] : memref<3x32xf32, #tpu.memory_space<vmem>>, vector<3x32xf32>
    %c0_1 = arith.constant 0 : index
    %c0_2 = arith.constant 0 : index
    %c0_3 = arith.constant 0 : index
    %1 = vector.load %arg7[%c0_1, %c0_2, %c0_3] : memref<2x6x32xf32, #tpu.memory_space<vmem>>, vector<2x6x32xf32>
    %c0_4 = arith.constant 0 : index
    %c0_5 = arith.constant 0 : index
    %c0_6 = arith.constant 0 : index
    %2 = vector.load %arg2[%c0_4, %c0_5, %c0_6] : memref<1x1x8xf32, #tpu.memory_space<vmem>>, vector<1x1x8xf32>
    %3 = vector.shape_cast %2 : vector<1x1x8xf32> to vector<1x8xf32>
    %c0_7 = arith.constant 0 : index
    %c0_8 = arith.constant 0 : index
    %c0_9 = arith.constant 0 : index
    %4 = vector.load %arg1[%c0_7, %c0_8, %c0_9] : memref<1x8x32xf32, #tpu.memory_space<vmem>>, vector<1x8x32xf32>
    %5 = vector.shape_cast %4 : vector<1x8x32xf32> to vector<8x32xf32>
    %6 = vector.extract_strided_slice %0 {offsets = [0, 0], sizes = [1, 32], strides = [1, 1]} : vector<3x32xf32> to vector<1x32xf32>
    %7 = vector.extract_strided_slice %0 {offsets = [1, 0], sizes = [1, 32], strides = [1, 1]} : vector<3x32xf32> to vector<1x32xf32>
    %cst = arith.constant dense<0.000000e+00> : vector<8xf32>
    %8 = vector.multi_reduction <add>, %5, %cst [1] : vector<8x32xf32> to vector<8xf32>
    %9 = vector.shape_cast %8 : vector<8xf32> to vector<8x1xf32>
    %cst_10 = arith.constant 3.200000e+01 : f32
    %10 = vector.broadcast %cst_10 : f32 to vector<8x1xf32>
    %11 = arith.divf %9, %10 : vector<8x1xf32>
    %12 = vector.broadcast %11 : vector<8x1xf32> to vector<8x32xf32>
    %13 = arith.subf %5, %12 : vector<8x32xf32>
    %14 = arith.mulf %13, %13 : vector<8x32xf32>
    %cst_11 = arith.constant dense<0.000000e+00> : vector<8xf32>
    %15 = vector.multi_reduction <add>, %14, %cst_11 [1] : vector<8x32xf32> to vector<8xf32>
    %16 = vector.shape_cast %15 : vector<8xf32> to vector<8x1xf32>
    %cst_12 = arith.constant 3.200000e+01 : f32
    %17 = vector.broadcast %cst_12 : f32 to vector<8x1xf32>
    %18 = arith.divf %16, %17 : vector<8x1xf32>
    %19 = vector.broadcast %11 : vector<8x1xf32> to vector<8x32xf32>
    %20 = arith.subf %5, %19 : vector<8x32xf32>
    %cst_13 = arith.constant 9.99999996E-13 : f32
    %21 = vector.broadcast %cst_13 : f32 to vector<8x1xf32>
    %22 = arith.addf %18, %21 : vector<8x1xf32>
    %23 = math.rsqrt %22 : vector<8x1xf32>
    %24 = vector.broadcast %23 : vector<8x1xf32> to vector<8x32xf32>
    %25 = arith.mulf %20, %24 : vector<8x32xf32>
    %26 = vector.broadcast %6 : vector<1x32xf32> to vector<8x32xf32>
    %27 = arith.mulf %25, %26 : vector<8x32xf32>
    %28 = vector.broadcast %7 : vector<1x32xf32> to vector<8x32xf32>
    %29 = arith.addf %27, %28 : vector<8x32xf32>
    %30 = vector.extract_strided_slice %1 {offsets = [0, 0, 0], sizes = [1, 6, 32], strides = [1, 1, 1]} : vector<2x6x32xf32> to vector<1x6x32xf32>
    %31 = vector.shape_cast %30 : vector<1x6x32xf32> to vector<6x32xf32>
    %32 = arith.truncf %29 : vector<8x32xf32> to vector<8x32xbf16>
    %c0_14 = arith.constant 0 : index
    %c0_15 = arith.constant 0 : index
    %c0_16 = arith.constant 0 : index
    %33 = vector.load %arg4[%c0_14, %c0_15, %c0_16] : memref<2x32x96xbf16, #tpu.memory_space<vmem>>, vector<1x32x96xbf16>
    %34 = vector.shape_cast %33 : vector<1x32x96xbf16> to vector<32x96xbf16>
    %cst_17 = arith.constant dense<0.000000e+00> : vector<8x96xf32>
    %35 = tpu.matmul %32, %34, %cst_17 {dimension_numbers = #tpu.dot_dimension_numbers<[1], [0], [0], [1], [0, 0, 1, 1], [], []>} : vector<8x32xbf16>, vector<32x96xbf16>, vector<8x96xf32> -> vector<8x96xf32>
    %c0_18 = arith.constant 0 : index
    %c0_19 = arith.constant 0 : index
    %c0_20 = arith.constant 0 : index
    %36 = vector.load %arg5[%c0_18, %c0_19, %c0_20] : memref<2x1x96xf32, #tpu.memory_space<vmem>>, vector<1x1x96xf32>
    %37 = vector.shape_cast %36 : vector<1x1x96xf32> to vector<1x96xf32>
    %38 = vector.broadcast %37 : vector<1x96xf32> to vector<8x96xf32>
    %39 = arith.addf %35, %38 : vector<8x96xf32>
    %40 = arith.truncf %39 : vector<8x96xf32> to vector<8x96xbf16>
    %41 = vector.extract_strided_slice %40 {offsets = [0, 0], sizes = [8, 8], strides = [1, 1]} : vector<8x96xbf16> to vector<8x8xbf16>
    %42 = vector.extract_strided_slice %40 {offsets = [0, 32], sizes = [8, 8], strides = [1, 1]} : vector<8x96xbf16> to vector<8x8xbf16>
    %43 = vector.extract_strided_slice %40 {offsets = [0, 64], sizes = [8, 8], strides = [1, 1]} : vector<8x96xbf16> to vector<8x8xbf16>
    "tpu.trace_start"() <{level = 10 : i32, message = "qd,kd->qk"}> : () -> ()
    %cst_21 = arith.constant dense<0.000000e+00> : vector<8x8xf32>
    %44 = tpu.matmul %41, %42, %cst_21 {dimension_numbers = #tpu.dot_dimension_numbers<[1], [1], [0], [0], [0, 0, 1, 0], [], []>} : vector<8x8xbf16>, vector<8x8xbf16>, vector<8x8xf32> -> vector<8x8xf32>
    "tpu.trace_stop"() : () -> ()
    %45 = vector.broadcast %3 : vector<1x8xf32> to vector<8x8xf32>
    %46 = arith.addf %44, %45 : vector<8x8xf32>
    %cst_22 = arith.constant dense<0xFF800000> : vector<8xf32>
    %47 = vector.multi_reduction <maximumf>, %46, %cst_22 [1] : vector<8x8xf32> to vector<8xf32>
    %48 = vector.shape_cast %47 : vector<8xf32> to vector<8x1xf32>
    %49 = vector.broadcast %48 : vector<8x1xf32> to vector<8x8xf32>
    %50 = arith.subf %46, %49 : vector<8x8xf32>
    %51 = math.exp %50 : vector<8x8xf32>
    %cst_23 = arith.constant dense<0.000000e+00> : vector<8xf32>
    %52 = vector.multi_reduction <add>, %51, %cst_23 [1] : vector<8x8xf32> to vector<8xf32>
    %53 = vector.shape_cast %52 : vector<8xf32> to vector<8x1xf32>
    %54 = vector.broadcast %53 : vector<8x1xf32> to vector<8x8xf32>
    %55 = arith.divf %51, %54 : vector<8x8xf32>
    %56 = arith.truncf %55 : vector<8x8xf32> to vector<8x8xbf16>
    %cst_24 = arith.constant dense<0.000000e+00> : vector<8x8xf32>
    %57 = tpu.matmul %56, %43, %cst_24 {dimension_numbers = #tpu.dot_dimension_numbers<[1], [0], [0], [1], [0, 0, 1, 1], [], []>} : vector<8x8xbf16>, vector<8x8xbf16>, vector<8x8xf32> -> vector<8x8xf32>
    %58 = vector.extract_strided_slice %40 {offsets = [0, 8], sizes = [8, 8], strides = [1, 1]} : vector<8x96xbf16> to vector<8x8xbf16>
    %59 = vector.extract_strided_slice %40 {offsets = [0, 40], sizes = [8, 8], strides = [1, 1]} : vector<8x96xbf16> to vector<8x8xbf16>
    %60 = vector.extract_strided_slice %40 {offsets = [0, 72], sizes = [8, 8], strides = [1, 1]} : vector<8x96xbf16> to vector<8x8xbf16>
    "tpu.trace_start"() <{level = 10 : i32, message = "qd,kd->qk"}> : () -> ()
    %cst_25 = arith.constant dense<0.000000e+00> : vector<8x8xf32>
    %61 = tpu.matmul %58, %59, %cst_25 {dimension_numbers = #tpu.dot_dimension_numbers<[1], [1], [0], [0], [0, 0, 1, 0], [], []>} : vector<8x8xbf16>, vector<8x8xbf16>, vector<8x8xf32> -> vector<8x8xf32>
    "tpu.trace_stop"() : () -> ()
    %62 = vector.broadcast %3 : vector<1x8xf32> to vector<8x8xf32>
    %63 = arith.addf %61, %62 : vector<8x8xf32>
    %cst_26 = arith.constant dense<0xFF800000> : vector<8xf32>
    %64 = vector.multi_reduction <maximumf>, %63, %cst_26 [1] : vector<8x8xf32> to vector<8xf32>
    %65 = vector.shape_cast %64 : vector<8xf32> to vector<8x1xf32>
    %66 = vector.broadcast %65 : vector<8x1xf32> to vector<8x8xf32>
    %67 = arith.subf %63, %66 : vector<8x8xf32>
    %68 = math.exp %67 : vector<8x8xf32>
    %cst_27 = arith.constant dense<0.000000e+00> : vector<8xf32>
    %69 = vector.multi_reduction <add>, %68, %cst_27 [1] : vector<8x8xf32> to vector<8xf32>
    %70 = vector.shape_cast %69 : vector<8xf32> to vector<8x1xf32>
    %71 = vector.broadcast %70 : vector<8x1xf32> to vector<8x8xf32>
    %72 = arith.divf %68, %71 : vector<8x8xf32>
    %73 = arith.truncf %72 : vector<8x8xf32> to vector<8x8xbf16>
    %cst_28 = arith.constant dense<0.000000e+00> : vector<8x8xf32>
    %74 = tpu.matmul %73, %60, %cst_28 {dimension_numbers = #tpu.dot_dimension_numbers<[1], [0], [0], [1], [0, 0, 1, 1], [], []>} : vector<8x8xbf16>, vector<8x8xbf16>, vector<8x8xf32> -> vector<8x8xf32>
    %75 = vector.extract_strided_slice %40 {offsets = [0, 16], sizes = [8, 8], strides = [1, 1]} : vector<8x96xbf16> to vector<8x8xbf16>
    %76 = vector.extract_strided_slice %40 {offsets = [0, 48], sizes = [8, 8], strides = [1, 1]} : vector<8x96xbf16> to vector<8x8xbf16>
    %77 = vector.extract_strided_slice %40 {offsets = [0, 80], sizes = [8, 8], strides = [1, 1]} : vector<8x96xbf16> to vector<8x8xbf16>
    "tpu.trace_start"() <{level = 10 : i32, message = "qd,kd->qk"}> : () -> ()
    %cst_29 = arith.constant dense<0.000000e+00> : vector<8x8xf32>
    %78 = tpu.matmul %75, %76, %cst_29 {dimension_numbers = #tpu.dot_dimension_numbers<[1], [1], [0], [0], [0, 0, 1, 0], [], []>} : vector<8x8xbf16>, vector<8x8xbf16>, vector<8x8xf32> -> vector<8x8xf32>
    "tpu.trace_stop"() : () -> ()
    %79 = vector.broadcast %3 : vector<1x8xf32> to vector<8x8xf32>
    %80 = arith.addf %78, %79 : vector<8x8xf32>
    %cst_30 = arith.constant dense<0xFF800000> : vector<8xf32>
    %81 = vector.multi_reduction <maximumf>, %80, %cst_30 [1] : vector<8x8xf32> to vector<8xf32>
    %82 = vector.shape_cast %81 : vector<8xf32> to vector<8x1xf32>
    %83 = vector.broadcast %82 : vector<8x1xf32> to vector<8x8xf32>
    %84 = arith.subf %80, %83 : vector<8x8xf32>
    %85 = math.exp %84 : vector<8x8xf32>
    %cst_31 = arith.constant dense<0.000000e+00> : vector<8xf32>
    %86 = vector.multi_reduction <add>, %85, %cst_31 [1] : vector<8x8xf32> to vector<8xf32>
    %87 = vector.shape_cast %86 : vector<8xf32> to vector<8x1xf32>
    %88 = vector.broadcast %87 : vector<8x1xf32> to vector<8x8xf32>
    %89 = arith.divf %85, %88 : vector<8x8xf32>
    %90 = arith.truncf %89 : vector<8x8xf32> to vector<8x8xbf16>
    %cst_32 = arith.constant dense<0.000000e+00> : vector<8x8xf32>
    %91 = tpu.matmul %90, %77, %cst_32 {dimension_numbers = #tpu.dot_dimension_numbers<[1], [0], [0], [1], [0, 0, 1, 1], [], []>} : vector<8x8xbf16>, vector<8x8xbf16>, vector<8x8xf32> -> vector<8x8xf32>
    %92 = vector.extract_strided_slice %40 {offsets = [0, 24], sizes = [8, 8], strides = [1, 1]} : vector<8x96xbf16> to vector<8x8xbf16>
    %93 = vector.extract_strided_slice %40 {offsets = [0, 56], sizes = [8, 8], strides = [1, 1]} : vector<8x96xbf16> to vector<8x8xbf16>
    %94 = vector.extract_strided_slice %40 {offsets = [0, 88], sizes = [8, 8], strides = [1, 1]} : vector<8x96xbf16> to vector<8x8xbf16>
    "tpu.trace_start"() <{level = 10 : i32, message = "qd,kd->qk"}> : () -> ()
    %cst_33 = arith.constant dense<0.000000e+00> : vector<8x8xf32>
    %95 = tpu.matmul %92, %93, %cst_33 {dimension_numbers = #tpu.dot_dimension_numbers<[1], [1], [0], [0], [0, 0, 1, 0], [], []>} : vector<8x8xbf16>, vector<8x8xbf16>, vector<8x8xf32> -> vector<8x8xf32>
    "tpu.trace_stop"() : () -> ()
    %96 = vector.broadcast %3 : vector<1x8xf32> to vector<8x8xf32>
    %97 = arith.addf %95, %96 : vector<8x8xf32>
    %cst_34 = arith.constant dense<0xFF800000> : vector<8xf32>
    %98 = vector.multi_reduction <maximumf>, %97, %cst_34 [1] : vector<8x8xf32> to vector<8xf32>
    %99 = vector.shape_cast %98 : vector<8xf32> to vector<8x1xf32>
    %100 = vector.broadcast %99 : vector<8x1xf32> to vector<8x8xf32>
    %101 = arith.subf %97, %100 : vector<8x8xf32>
    %102 = math.exp %101 : vector<8x8xf32>
    %cst_35 = arith.constant dense<0.000000e+00> : vector<8xf32>
    %103 = vector.multi_reduction <add>, %102, %cst_35 [1] : vector<8x8xf32> to vector<8xf32>
    %104 = vector.shape_cast %103 : vector<8xf32> to vector<8x1xf32>
    %105 = vector.broadcast %104 : vector<8x1xf32> to vector<8x8xf32>
    %106 = arith.divf %102, %105 : vector<8x8xf32>
    %107 = arith.truncf %106 : vector<8x8xf32> to vector<8x8xbf16>
    %cst_36 = arith.constant dense<0.000000e+00> : vector<8x8xf32>
    %108 = tpu.matmul %107, %94, %cst_36 {dimension_numbers = #tpu.dot_dimension_numbers<[1], [0], [0], [1], [0, 0, 1, 1], [], []>} : vector<8x8xbf16>, vector<8x8xbf16>, vector<8x8xf32> -> vector<8x8xf32>
    %109 = tpu.concatenate %57, %74, %91, %108 in 1 : vector<8x8xf32>, vector<8x8xf32>, vector<8x8xf32>, vector<8x8xf32> -> vector<8x32xf32>
    %110 = arith.truncf %109 : vector<8x32xf32> to vector<8x32xbf16>
    %c0_37 = arith.constant 0 : index
    %c0_38 = arith.constant 0 : index
    %c0_39 = arith.constant 0 : index
    %111 = vector.load %arg6[%c0_37, %c0_38, %c0_39] : memref<2x32x32xbf16, #tpu.memory_space<vmem>>, vector<1x32x32xbf16>
    %112 = vector.shape_cast %111 : vector<1x32x32xbf16> to vector<32x32xbf16>
    %cst_40 = arith.constant dense<0.000000e+00> : vector<8x32xf32>
    %113 = tpu.matmul %110, %112, %cst_40 {dimension_numbers = #tpu.dot_dimension_numbers<[1], [0], [0], [1], [0, 0, 1, 1], [], []>} : vector<8x32xbf16>, vector<32x32xbf16>, vector<8x32xf32> -> vector<8x32xf32>
    %114 = vector.extract_strided_slice %31 {offsets = [0, 0], sizes = [1, 32], strides = [1, 1]} : vector<6x32xf32> to vector<1x32xf32>
    %115 = vector.broadcast %114 : vector<1x32xf32> to vector<8x32xf32>
    %116 = arith.addf %113, %115 : vector<8x32xf32>
    %117 = arith.addf %116, %29 : vector<8x32xf32>
    %118 = vector.extract_strided_slice %31 {offsets = [1, 0], sizes = [1, 32], strides = [1, 1]} : vector<6x32xf32> to vector<1x32xf32>
    %119 = vector.extract_strided_slice %31 {offsets = [2, 0], sizes = [1, 32], strides = [1, 1]} : vector<6x32xf32> to vector<1x32xf32>
    %cst_41 = arith.constant dense<0.000000e+00> : vector<8xf32>
    %120 = vector.multi_reduction <add>, %117, %cst_41 [1] : vector<8x32xf32> to vector<8xf32>
    %121 = vector.shape_cast %120 : vector<8xf32> to vector<8x1xf32>
    %cst_42 = arith.constant 3.200000e+01 : f32
    %122 = vector.broadcast %cst_42 : f32 to vector<8x1xf32>
    %123 = arith.divf %121, %122 : vector<8x1xf32>
    %124 = vector.broadcast %123 : vector<8x1xf32> to vector<8x32xf32>
    %125 = arith.subf %117, %124 : vector<8x32xf32>
    %126 = arith.mulf %125, %125 : vector<8x32xf32>
    %cst_43 = arith.constant dense<0.000000e+00> : vector<8xf32>
    %127 = vector.multi_reduction <add>, %126, %cst_43 [1] : vector<8x32xf32> to vector<8xf32>
    %128 = vector.shape_cast %127 : vector<8xf32> to vector<8x1xf32>
    %cst_44 = arith.constant 3.200000e+01 : f32
    %129 = vector.broadcast %cst_44 : f32 to vector<8x1xf32>
    %130 = arith.divf %128, %129 : vector<8x1xf32>
    %131 = vector.broadcast %123 : vector<8x1xf32> to vector<8x32xf32>
    %132 = arith.subf %117, %131 : vector<8x32xf32>
    %cst_45 = arith.constant 9.99999996E-13 : f32
    %133 = vector.broadcast %cst_45 : f32 to vector<8x1xf32>
    %134 = arith.addf %130, %133 : vector<8x1xf32>
    %135 = math.rsqrt %134 : vector<8x1xf32>
    %136 = vector.broadcast %135 : vector<8x1xf32> to vector<8x32xf32>
    %137 = arith.mulf %132, %136 : vector<8x32xf32>
    %138 = vector.broadcast %118 : vector<1x32xf32> to vector<8x32xf32>
    %139 = arith.mulf %137, %138 : vector<8x32xf32>
    %140 = vector.broadcast %119 : vector<1x32xf32> to vector<8x32xf32>
    %141 = arith.addf %139, %140 : vector<8x32xf32>
    %142 = arith.truncf %141 : vector<8x32xf32> to vector<8x32xbf16>
    %c0_46 = arith.constant 0 : index
    %c0_47 = arith.constant 0 : index
    %c0_48 = arith.constant 0 : index
    %143 = vector.load %arg8[%c0_46, %c0_47, %c0_48] : memref<2x32x64xbf16, #tpu.memory_space<vmem>>, vector<1x32x64xbf16>
    %144 = vector.shape_cast %143 : vector<1x32x64xbf16> to vector<32x64xbf16>
    %cst_49 = arith.constant dense<0.000000e+00> : vector<8x64xf32>
    %145 = tpu.matmul %142, %144, %cst_49 {dimension_numbers = #tpu.dot_dimension_numbers<[1], [0], [0], [1], [0, 0, 1, 1], [], []>} : vector<8x32xbf16>, vector<32x64xbf16>, vector<8x64xf32> -> vector<8x64xf32>
    %c0_50 = arith.constant 0 : index
    %c0_51 = arith.constant 0 : index
    %c0_52 = arith.constant 0 : index
    %146 = vector.load %arg9[%c0_50, %c0_51, %c0_52] : memref<2x1x64xf32, #tpu.memory_space<vmem>>, vector<1x1x64xf32>
    %147 = vector.shape_cast %146 : vector<1x1x64xf32> to vector<1x64xf32>
    %148 = vector.broadcast %147 : vector<1x64xf32> to vector<8x64xf32>
    %149 = arith.addf %145, %148 : vector<8x64xf32>
    %cst_53 = arith.constant 5.000000e-01 : f32
    %150 = vector.broadcast %cst_53 : f32 to vector<8x64xf32>
    %151 = arith.mulf %150, %149 : vector<8x64xf32>
    %cst_54 = arith.constant 4.471500e-02 : f32
    %152 = vector.broadcast %cst_54 : f32 to vector<8x64xf32>
    %153 = arith.mulf %152, %149 : vector<8x64xf32>
    %154 = arith.mulf %153, %149 : vector<8x64xf32>
    %155 = arith.mulf %154, %149 : vector<8x64xf32>
    %156 = arith.addf %149, %155 : vector<8x64xf32>
    %cst_55 = arith.constant 0.797884583 : f32
    %157 = vector.broadcast %cst_55 : f32 to vector<8x64xf32>
    %158 = arith.mulf %157, %156 : vector<8x64xf32>
    %159 = math.tanh %158 : vector<8x64xf32>
    %cst_56 = arith.constant 1.000000e+00 : f32
    %160 = vector.broadcast %cst_56 : f32 to vector<8x64xf32>
    %161 = arith.addf %160, %159 : vector<8x64xf32>
    %162 = arith.mulf %151, %161 : vector<8x64xf32>
    %163 = arith.truncf %162 : vector<8x64xf32> to vector<8x64xbf16>
    %c0_57 = arith.constant 0 : index
    %c0_58 = arith.constant 0 : index
    %c0_59 = arith.constant 0 : index
    %164 = vector.load %arg10[%c0_57, %c0_58, %c0_59] : memref<2x64x32xbf16, #tpu.memory_space<vmem>>, vector<1x64x32xbf16>
    %165 = vector.shape_cast %164 : vector<1x64x32xbf16> to vector<64x32xbf16>
    %cst_60 = arith.constant dense<0.000000e+00> : vector<8x32xf32>
    %166 = tpu.matmul %163, %165, %cst_60 {dimension_numbers = #tpu.dot_dimension_numbers<[1], [0], [0], [1], [0, 0, 1, 1], [], []>} : vector<8x64xbf16>, vector<64x32xbf16>, vector<8x32xf32> -> vector<8x32xf32>
    %167 = vector.extract_strided_slice %31 {offsets = [3, 0], sizes = [1, 32], strides = [1, 1]} : vector<6x32xf32> to vector<1x32xf32>
    %168 = vector.broadcast %167 : vector<1x32xf32> to vector<8x32xf32>
    %169 = arith.addf %166, %168 : vector<8x32xf32>
    %170 = arith.addf %169, %141 : vector<8x32xf32>
    %171 = vector.extract_strided_slice %31 {offsets = [4, 0], sizes = [1, 32], strides = [1, 1]} : vector<6x32xf32> to vector<1x32xf32>
    %172 = vector.extract_strided_slice %31 {offsets = [5, 0], sizes = [1, 32], strides = [1, 1]} : vector<6x32xf32> to vector<1x32xf32>
    %cst_61 = arith.constant dense<0.000000e+00> : vector<8xf32>
    %173 = vector.multi_reduction <add>, %170, %cst_61 [1] : vector<8x32xf32> to vector<8xf32>
    %174 = vector.shape_cast %173 : vector<8xf32> to vector<8x1xf32>
    %cst_62 = arith.constant 3.200000e+01 : f32
    %175 = vector.broadcast %cst_62 : f32 to vector<8x1xf32>
    %176 = arith.divf %174, %175 : vector<8x1xf32>
    %177 = vector.broadcast %176 : vector<8x1xf32> to vector<8x32xf32>
    %178 = arith.subf %170, %177 : vector<8x32xf32>
    %179 = arith.mulf %178, %178 : vector<8x32xf32>
    %cst_63 = arith.constant dense<0.000000e+00> : vector<8xf32>
    %180 = vector.multi_reduction <add>, %179, %cst_63 [1] : vector<8x32xf32> to vector<8xf32>
    %181 = vector.shape_cast %180 : vector<8xf32> to vector<8x1xf32>
    %cst_64 = arith.constant 3.200000e+01 : f32
    %182 = vector.broadcast %cst_64 : f32 to vector<8x1xf32>
    %183 = arith.divf %181, %182 : vector<8x1xf32>
    %184 = vector.broadcast %176 : vector<8x1xf32> to vector<8x32xf32>
    %185 = arith.subf %170, %184 : vector<8x32xf32>
    %cst_65 = arith.constant 9.99999996E-13 : f32
    %186 = vector.broadcast %cst_65 : f32 to vector<8x1xf32>
    %187 = arith.addf %183, %186 : vector<8x1xf32>
    %188 = math.rsqrt %187 : vector<8x1xf32>
    %189 = vector.broadcast %188 : vector<8x1xf32> to vector<8x32xf32>
    %190 = arith.mulf %185, %189 : vector<8x32xf32>
    %191 = vector.broadcast %171 : vector<1x32xf32> to vector<8x32xf32>
    %192 = arith.mulf %190, %191 : vector<8x32xf32>
    %193 = vector.broadcast %172 : vector<1x32xf32> to vector<8x32xf32>
    %194 = arith.addf %192, %193 : vector<8x32xf32>
    %195 = vector.extract_strided_slice %1 {offsets = [1, 0, 0], sizes = [1, 6, 32], strides = [1, 1, 1]} : vector<2x6x32xf32> to vector<1x6x32xf32>
    %196 = vector.shape_cast %195 : vector<1x6x32xf32> to vector<6x32xf32>
    %197 = arith.truncf %194 : vector<8x32xf32> to vector<8x32xbf16>
    %c1 = arith.constant 1 : index
    %c0_66 = arith.constant 0 : index
    %c0_67 = arith.constant 0 : index
    %198 = vector.load %arg4[%c1, %c0_66, %c0_67] : memref<2x32x96xbf16, #tpu.memory_space<vmem>>, vector<1x32x96xbf16>
    %199 = vector.shape_cast %198 : vector<1x32x96xbf16> to vector<32x96xbf16>
    %cst_68 = arith.constant dense<0.000000e+00> : vector<8x96xf32>
    %200 = tpu.matmul %197, %199, %cst_68 {dimension_numbers = #tpu.dot_dimension_numbers<[1], [0], [0], [1], [0, 0, 1, 1], [], []>} : vector<8x32xbf16>, vector<32x96xbf16>, vector<8x96xf32> -> vector<8x96xf32>
    %c1_69 = arith.constant 1 : index
    %c0_70 = arith.constant 0 : index
    %c0_71 = arith.constant 0 : index
    %201 = vector.load %arg5[%c1_69, %c0_70, %c0_71] : memref<2x1x96xf32, #tpu.memory_space<vmem>>, vector<1x1x96xf32>
    %202 = vector.shape_cast %201 : vector<1x1x96xf32> to vector<1x96xf32>
    %203 = vector.broadcast %202 : vector<1x96xf32> to vector<8x96xf32>
    %204 = arith.addf %200, %203 : vector<8x96xf32>
    %205 = arith.truncf %204 : vector<8x96xf32> to vector<8x96xbf16>
    %206 = vector.extract_strided_slice %205 {offsets = [0, 0], sizes = [8, 8], strides = [1, 1]} : vector<8x96xbf16> to vector<8x8xbf16>
    %207 = vector.extract_strided_slice %205 {offsets = [0, 32], sizes = [8, 8], strides = [1, 1]} : vector<8x96xbf16> to vector<8x8xbf16>
    %208 = vector.extract_strided_slice %205 {offsets = [0, 64], sizes = [8, 8], strides = [1, 1]} : vector<8x96xbf16> to vector<8x8xbf16>
    "tpu.trace_start"() <{level = 10 : i32, message = "qd,kd->qk"}> : () -> ()
    %cst_72 = arith.constant dense<0.000000e+00> : vector<8x8xf32>
    %209 = tpu.matmul %206, %207, %cst_72 {dimension_numbers = #tpu.dot_dimension_numbers<[1], [1], [0], [0], [0, 0, 1, 0], [], []>} : vector<8x8xbf16>, vector<8x8xbf16>, vector<8x8xf32> -> vector<8x8xf32>
    "tpu.trace_stop"() : () -> ()
    %210 = vector.broadcast %3 : vector<1x8xf32> to vector<8x8xf32>
    %211 = arith.addf %209, %210 : vector<8x8xf32>
    %cst_73 = arith.constant dense<0xFF800000> : vector<8xf32>
    %212 = vector.multi_reduction <maximumf>, %211, %cst_73 [1] : vector<8x8xf32> to vector<8xf32>
    %213 = vector.shape_cast %212 : vector<8xf32> to vector<8x1xf32>
    %214 = vector.broadcast %213 : vector<8x1xf32> to vector<8x8xf32>
    %215 = arith.subf %211, %214 : vector<8x8xf32>
    %216 = math.exp %215 : vector<8x8xf32>
    %cst_74 = arith.constant dense<0.000000e+00> : vector<8xf32>
    %217 = vector.multi_reduction <add>, %216, %cst_74 [1] : vector<8x8xf32> to vector<8xf32>
    %218 = vector.shape_cast %217 : vector<8xf32> to vector<8x1xf32>
    %219 = vector.broadcast %218 : vector<8x1xf32> to vector<8x8xf32>
    %220 = arith.divf %216, %219 : vector<8x8xf32>
    %221 = arith.truncf %220 : vector<8x8xf32> to vector<8x8xbf16>
    %cst_75 = arith.constant dense<0.000000e+00> : vector<8x8xf32>
    %222 = tpu.matmul %221, %208, %cst_75 {dimension_numbers = #tpu.dot_dimension_numbers<[1], [0], [0], [1], [0, 0, 1, 1], [], []>} : vector<8x8xbf16>, vector<8x8xbf16>, vector<8x8xf32> -> vector<8x8xf32>
    %223 = vector.extract_strided_slice %205 {offsets = [0, 8], sizes = [8, 8], strides = [1, 1]} : vector<8x96xbf16> to vector<8x8xbf16>
    %224 = vector.extract_strided_slice %205 {offsets = [0, 40], sizes = [8, 8], strides = [1, 1]} : vector<8x96xbf16> to vector<8x8xbf16>
    %225 = vector.extract_strided_slice %205 {offsets = [0, 72], sizes = [8, 8], strides = [1, 1]} : vector<8x96xbf16> to vector<8x8xbf16>
    "tpu.trace_start"() <{level = 10 : i32, message = "qd,kd->qk"}> : () -> ()
    %cst_76 = arith.constant dense<0.000000e+00> : vector<8x8xf32>
    %226 = tpu.matmul %223, %224, %cst_76 {dimension_numbers = #tpu.dot_dimension_numbers<[1], [1], [0], [0], [0, 0, 1, 0], [], []>} : vector<8x8xbf16>, vector<8x8xbf16>, vector<8x8xf32> -> vector<8x8xf32>
    "tpu.trace_stop"() : () -> ()
    %227 = vector.broadcast %3 : vector<1x8xf32> to vector<8x8xf32>
    %228 = arith.addf %226, %227 : vector<8x8xf32>
    %cst_77 = arith.constant dense<0xFF800000> : vector<8xf32>
    %229 = vector.multi_reduction <maximumf>, %228, %cst_77 [1] : vector<8x8xf32> to vector<8xf32>
    %230 = vector.shape_cast %229 : vector<8xf32> to vector<8x1xf32>
    %231 = vector.broadcast %230 : vector<8x1xf32> to vector<8x8xf32>
    %232 = arith.subf %228, %231 : vector<8x8xf32>
    %233 = math.exp %232 : vector<8x8xf32>
    %cst_78 = arith.constant dense<0.000000e+00> : vector<8xf32>
    %234 = vector.multi_reduction <add>, %233, %cst_78 [1] : vector<8x8xf32> to vector<8xf32>
    %235 = vector.shape_cast %234 : vector<8xf32> to vector<8x1xf32>
    %236 = vector.broadcast %235 : vector<8x1xf32> to vector<8x8xf32>
    %237 = arith.divf %233, %236 : vector<8x8xf32>
    %238 = arith.truncf %237 : vector<8x8xf32> to vector<8x8xbf16>
    %cst_79 = arith.constant dense<0.000000e+00> : vector<8x8xf32>
    %239 = tpu.matmul %238, %225, %cst_79 {dimension_numbers = #tpu.dot_dimension_numbers<[1], [0], [0], [1], [0, 0, 1, 1], [], []>} : vector<8x8xbf16>, vector<8x8xbf16>, vector<8x8xf32> -> vector<8x8xf32>
    %240 = vector.extract_strided_slice %205 {offsets = [0, 16], sizes = [8, 8], strides = [1, 1]} : vector<8x96xbf16> to vector<8x8xbf16>
    %241 = vector.extract_strided_slice %205 {offsets = [0, 48], sizes = [8, 8], strides = [1, 1]} : vector<8x96xbf16> to vector<8x8xbf16>
    %242 = vector.extract_strided_slice %205 {offsets = [0, 80], sizes = [8, 8], strides = [1, 1]} : vector<8x96xbf16> to vector<8x8xbf16>
    "tpu.trace_start"() <{level = 10 : i32, message = "qd,kd->qk"}> : () -> ()
    %cst_80 = arith.constant dense<0.000000e+00> : vector<8x8xf32>
    %243 = tpu.matmul %240, %241, %cst_80 {dimension_numbers = #tpu.dot_dimension_numbers<[1], [1], [0], [0], [0, 0, 1, 0], [], []>} : vector<8x8xbf16>, vector<8x8xbf16>, vector<8x8xf32> -> vector<8x8xf32>
    "tpu.trace_stop"() : () -> ()
    %244 = vector.broadcast %3 : vector<1x8xf32> to vector<8x8xf32>
    %245 = arith.addf %243, %244 : vector<8x8xf32>
    %cst_81 = arith.constant dense<0xFF800000> : vector<8xf32>
    %246 = vector.multi_reduction <maximumf>, %245, %cst_81 [1] : vector<8x8xf32> to vector<8xf32>
    %247 = vector.shape_cast %246 : vector<8xf32> to vector<8x1xf32>
    %248 = vector.broadcast %247 : vector<8x1xf32> to vector<8x8xf32>
    %249 = arith.subf %245, %248 : vector<8x8xf32>
    %250 = math.exp %249 : vector<8x8xf32>
    %cst_82 = arith.constant dense<0.000000e+00> : vector<8xf32>
    %251 = vector.multi_reduction <add>, %250, %cst_82 [1] : vector<8x8xf32> to vector<8xf32>
    %252 = vector.shape_cast %251 : vector<8xf32> to vector<8x1xf32>
    %253 = vector.broadcast %252 : vector<8x1xf32> to vector<8x8xf32>
    %254 = arith.divf %250, %253 : vector<8x8xf32>
    %255 = arith.truncf %254 : vector<8x8xf32> to vector<8x8xbf16>
    %cst_83 = arith.constant dense<0.000000e+00> : vector<8x8xf32>
    %256 = tpu.matmul %255, %242, %cst_83 {dimension_numbers = #tpu.dot_dimension_numbers<[1], [0], [0], [1], [0, 0, 1, 1], [], []>} : vector<8x8xbf16>, vector<8x8xbf16>, vector<8x8xf32> -> vector<8x8xf32>
    %257 = vector.extract_strided_slice %205 {offsets = [0, 24], sizes = [8, 8], strides = [1, 1]} : vector<8x96xbf16> to vector<8x8xbf16>
    %258 = vector.extract_strided_slice %205 {offsets = [0, 56], sizes = [8, 8], strides = [1, 1]} : vector<8x96xbf16> to vector<8x8xbf16>
    %259 = vector.extract_strided_slice %205 {offsets = [0, 88], sizes = [8, 8], strides = [1, 1]} : vector<8x96xbf16> to vector<8x8xbf16>
    "tpu.trace_start"() <{level = 10 : i32, message = "qd,kd->qk"}> : () -> ()
    %cst_84 = arith.constant dense<0.000000e+00> : vector<8x8xf32>
    %260 = tpu.matmul %257, %258, %cst_84 {dimension_numbers = #tpu.dot_dimension_numbers<[1], [1], [0], [0], [0, 0, 1, 0], [], []>} : vector<8x8xbf16>, vector<8x8xbf16>, vector<8x8xf32> -> vector<8x8xf32>
    "tpu.trace_stop"() : () -> ()
    %261 = vector.broadcast %3 : vector<1x8xf32> to vector<8x8xf32>
    %262 = arith.addf %260, %261 : vector<8x8xf32>
    %cst_85 = arith.constant dense<0xFF800000> : vector<8xf32>
    %263 = vector.multi_reduction <maximumf>, %262, %cst_85 [1] : vector<8x8xf32> to vector<8xf32>
    %264 = vector.shape_cast %263 : vector<8xf32> to vector<8x1xf32>
    %265 = vector.broadcast %264 : vector<8x1xf32> to vector<8x8xf32>
    %266 = arith.subf %262, %265 : vector<8x8xf32>
    %267 = math.exp %266 : vector<8x8xf32>
    %cst_86 = arith.constant dense<0.000000e+00> : vector<8xf32>
    %268 = vector.multi_reduction <add>, %267, %cst_86 [1] : vector<8x8xf32> to vector<8xf32>
    %269 = vector.shape_cast %268 : vector<8xf32> to vector<8x1xf32>
    %270 = vector.broadcast %269 : vector<8x1xf32> to vector<8x8xf32>
    %271 = arith.divf %267, %270 : vector<8x8xf32>
    %272 = arith.truncf %271 : vector<8x8xf32> to vector<8x8xbf16>
    %cst_87 = arith.constant dense<0.000000e+00> : vector<8x8xf32>
    %273 = tpu.matmul %272, %259, %cst_87 {dimension_numbers = #tpu.dot_dimension_numbers<[1], [0], [0], [1], [0, 0, 1, 1], [], []>} : vector<8x8xbf16>, vector<8x8xbf16>, vector<8x8xf32> -> vector<8x8xf32>
    %274 = tpu.concatenate %222, %239, %256, %273 in 1 : vector<8x8xf32>, vector<8x8xf32>, vector<8x8xf32>, vector<8x8xf32> -> vector<8x32xf32>
    %275 = arith.truncf %274 : vector<8x32xf32> to vector<8x32xbf16>
    %c1_88 = arith.constant 1 : index
    %c0_89 = arith.constant 0 : index
    %c0_90 = arith.constant 0 : index
    %276 = vector.load %arg6[%c1_88, %c0_89, %c0_90] : memref<2x32x32xbf16, #tpu.memory_space<vmem>>, vector<1x32x32xbf16>
    %277 = vector.shape_cast %276 : vector<1x32x32xbf16> to vector<32x32xbf16>
    %cst_91 = arith.constant dense<0.000000e+00> : vector<8x32xf32>
    %278 = tpu.matmul %275, %277, %cst_91 {dimension_numbers = #tpu.dot_dimension_numbers<[1], [0], [0], [1], [0, 0, 1, 1], [], []>} : vector<8x32xbf16>, vector<32x32xbf16>, vector<8x32xf32> -> vector<8x32xf32>
    %279 = vector.extract_strided_slice %196 {offsets = [0, 0], sizes = [1, 32], strides = [1, 1]} : vector<6x32xf32> to vector<1x32xf32>
    %280 = vector.broadcast %279 : vector<1x32xf32> to vector<8x32xf32>
    %281 = arith.addf %278, %280 : vector<8x32xf32>
    %282 = arith.addf %281, %194 : vector<8x32xf32>
    %283 = vector.extract_strided_slice %196 {offsets = [1, 0], sizes = [1, 32], strides = [1, 1]} : vector<6x32xf32> to vector<1x32xf32>
    %284 = vector.extract_strided_slice %196 {offsets = [2, 0], sizes = [1, 32], strides = [1, 1]} : vector<6x32xf32> to vector<1x32xf32>
    %cst_92 = arith.constant dense<0.000000e+00> : vector<8xf32>
    %285 = vector.multi_reduction <add>, %282, %cst_92 [1] : vector<8x32xf32> to vector<8xf32>
    %286 = vector.shape_cast %285 : vector<8xf32> to vector<8x1xf32>
    %cst_93 = arith.constant 3.200000e+01 : f32
    %287 = vector.broadcast %cst_93 : f32 to vector<8x1xf32>
    %288 = arith.divf %286, %287 : vector<8x1xf32>
    %289 = vector.broadcast %288 : vector<8x1xf32> to vector<8x32xf32>
    %290 = arith.subf %282, %289 : vector<8x32xf32>
    %291 = arith.mulf %290, %290 : vector<8x32xf32>
    %cst_94 = arith.constant dense<0.000000e+00> : vector<8xf32>
    %292 = vector.multi_reduction <add>, %291, %cst_94 [1] : vector<8x32xf32> to vector<8xf32>
    %293 = vector.shape_cast %292 : vector<8xf32> to vector<8x1xf32>
    %cst_95 = arith.constant 3.200000e+01 : f32
    %294 = vector.broadcast %cst_95 : f32 to vector<8x1xf32>
    %295 = arith.divf %293, %294 : vector<8x1xf32>
    %296 = vector.broadcast %288 : vector<8x1xf32> to vector<8x32xf32>
    %297 = arith.subf %282, %296 : vector<8x32xf32>
    %cst_96 = arith.constant 9.99999996E-13 : f32
    %298 = vector.broadcast %cst_96 : f32 to vector<8x1xf32>
    %299 = arith.addf %295, %298 : vector<8x1xf32>
    %300 = math.rsqrt %299 : vector<8x1xf32>
    %301 = vector.broadcast %300 : vector<8x1xf32> to vector<8x32xf32>
    %302 = arith.mulf %297, %301 : vector<8x32xf32>
    %303 = vector.broadcast %283 : vector<1x32xf32> to vector<8x32xf32>
    %304 = arith.mulf %302, %303 : vector<8x32xf32>
    %305 = vector.broadcast %284 : vector<1x32xf32> to vector<8x32xf32>
    %306 = arith.addf %304, %305 : vector<8x32xf32>
    %307 = arith.truncf %306 : vector<8x32xf32> to vector<8x32xbf16>
    %c1_97 = arith.constant 1 : index
    %c0_98 = arith.constant 0 : index
    %c0_99 = arith.constant 0 : index
    %308 = vector.load %arg8[%c1_97, %c0_98, %c0_99] : memref<2x32x64xbf16, #tpu.memory_space<vmem>>, vector<1x32x64xbf16>
    %309 = vector.shape_cast %308 : vector<1x32x64xbf16> to vector<32x64xbf16>
    %cst_100 = arith.constant dense<0.000000e+00> : vector<8x64xf32>
    %310 = tpu.matmul %307, %309, %cst_100 {dimension_numbers = #tpu.dot_dimension_numbers<[1], [0], [0], [1], [0, 0, 1, 1], [], []>} : vector<8x32xbf16>, vector<32x64xbf16>, vector<8x64xf32> -> vector<8x64xf32>
    %c1_101 = arith.constant 1 : index
    %c0_102 = arith.constant 0 : index
    %c0_103 = arith.constant 0 : index
    %311 = vector.load %arg9[%c1_101, %c0_102, %c0_103] : memref<2x1x64xf32, #tpu.memory_space<vmem>>, vector<1x1x64xf32>
    %312 = vector.shape_cast %311 : vector<1x1x64xf32> to vector<1x64xf32>
    %313 = vector.broadcast %312 : vector<1x64xf32> to vector<8x64xf32>
    %314 = arith.addf %310, %313 : vector<8x64xf32>
    %cst_104 = arith.constant 5.000000e-01 : f32
    %315 = vector.broadcast %cst_104 : f32 to vector<8x64xf32>
    %316 = arith.mulf %315, %314 : vector<8x64xf32>
    %cst_105 = arith.constant 4.471500e-02 : f32
    %317 = vector.broadcast %cst_105 : f32 to vector<8x64xf32>
    %318 = arith.mulf %317, %314 : vector<8x64xf32>
    %319 = arith.mulf %318, %314 : vector<8x64xf32>
    %320 = arith.mulf %319, %314 : vector<8x64xf32>
    %321 = arith.addf %314, %320 : vector<8x64xf32>
    %cst_106 = arith.constant 0.797884583 : f32
    %322 = vector.broadcast %cst_106 : f32 to vector<8x64xf32>
    %323 = arith.mulf %322, %321 : vector<8x64xf32>
    %324 = math.tanh %323 : vector<8x64xf32>
    %cst_107 = arith.constant 1.000000e+00 : f32
    %325 = vector.broadcast %cst_107 : f32 to vector<8x64xf32>
    %326 = arith.addf %325, %324 : vector<8x64xf32>
    %327 = arith.mulf %316, %326 : vector<8x64xf32>
    %328 = arith.truncf %327 : vector<8x64xf32> to vector<8x64xbf16>
    %c1_108 = arith.constant 1 : index
    %c0_109 = arith.constant 0 : index
    %c0_110 = arith.constant 0 : index
    %329 = vector.load %arg10[%c1_108, %c0_109, %c0_110] : memref<2x64x32xbf16, #tpu.memory_space<vmem>>, vector<1x64x32xbf16>
    %330 = vector.shape_cast %329 : vector<1x64x32xbf16> to vector<64x32xbf16>
    %cst_111 = arith.constant dense<0.000000e+00> : vector<8x32xf32>
    %331 = tpu.matmul %328, %330, %cst_111 {dimension_numbers = #tpu.dot_dimension_numbers<[1], [0], [0], [1], [0, 0, 1, 1], [], []>} : vector<8x64xbf16>, vector<64x32xbf16>, vector<8x32xf32> -> vector<8x32xf32>
    %332 = vector.extract_strided_slice %196 {offsets = [3, 0], sizes = [1, 32], strides = [1, 1]} : vector<6x32xf32> to vector<1x32xf32>
    %333 = vector.broadcast %332 : vector<1x32xf32> to vector<8x32xf32>
    %334 = arith.addf %331, %333 : vector<8x32xf32>
    %335 = arith.addf %334, %306 : vector<8x32xf32>
    %336 = vector.extract_strided_slice %196 {offsets = [4, 0], sizes = [1, 32], strides = [1, 1]} : vector<6x32xf32> to vector<1x32xf32>
    %337 = vector.extract_strided_slice %196 {offsets = [5, 0], sizes = [1, 32], strides = [1, 1]} : vector<6x32xf32> to vector<1x32xf32>
    %cst_112 = arith.constant dense<0.000000e+00> : vector<8xf32>
    %338 = vector.multi_reduction <add>, %335, %cst_112 [1] : vector<8x32xf32> to vector<8xf32>
    %339 = vector.shape_cast %338 : vector<8xf32> to vector<8x1xf32>
    %cst_113 = arith.constant 3.200000e+01 : f32
    %340 = vector.broadcast %cst_113 : f32 to vector<8x1xf32>
    %341 = arith.divf %339, %340 : vector<8x1xf32>
    %342 = vector.broadcast %341 : vector<8x1xf32> to vector<8x32xf32>
    %343 = arith.subf %335, %342 : vector<8x32xf32>
    %344 = arith.mulf %343, %343 : vector<8x32xf32>
    %cst_114 = arith.constant dense<0.000000e+00> : vector<8xf32>
    %345 = vector.multi_reduction <add>, %344, %cst_114 [1] : vector<8x32xf32> to vector<8xf32>
    %346 = vector.shape_cast %345 : vector<8xf32> to vector<8x1xf32>
    %cst_115 = arith.constant 3.200000e+01 : f32
    %347 = vector.broadcast %cst_115 : f32 to vector<8x1xf32>
    %348 = arith.divf %346, %347 : vector<8x1xf32>
    %349 = vector.broadcast %341 : vector<8x1xf32> to vector<8x32xf32>
    %350 = arith.subf %335, %349 : vector<8x32xf32>
    %cst_116 = arith.constant 9.99999996E-13 : f32
    %351 = vector.broadcast %cst_116 : f32 to vector<8x1xf32>
    %352 = arith.addf %348, %351 : vector<8x1xf32>
    %353 = math.rsqrt %352 : vector<8x1xf32>
    %354 = vector.broadcast %353 : vector<8x1xf32> to vector<8x32xf32>
    %355 = arith.mulf %350, %354 : vector<8x32xf32>
    %356 = vector.broadcast %336 : vector<1x32xf32> to vector<8x32xf32>
    %357 = arith.mulf %355, %356 : vector<8x32xf32>
    %358 = vector.broadcast %337 : vector<1x32xf32> to vector<8x32xf32>
    %359 = arith.addf %357, %358 : vector<8x32xf32>
    %360 = arith.truncf %359 : vector<8x32xf32> to vector<8x32xbf16>
    %c0_117 = arith.constant 0 : index
    %c0_118 = arith.constant 0 : index
    %361 = vector.load %arg11[%c0_117, %c0_118] : memref<32x32xbf16, #tpu.memory_space<vmem>>, vector<32x32xbf16>
    %cst_119 = arith.constant dense<0.000000e+00> : vector<8x32xf32>
    %362 = tpu.matmul %360, %361, %cst_119 {dimension_numbers = #tpu.dot_dimension_numbers<[1], [0], [0], [1], [0, 0, 1, 1], [], []>} : vector<8x32xbf16>, vector<32x32xbf16>, vector<8x32xf32> -> vector<8x32xf32>
    %363 = vector.extract_strided_slice %0 {offsets = [2, 0], sizes = [1, 32], strides = [1, 1]} : vector<3x32xf32> to vector<1x32xf32>
    %364 = vector.broadcast %363 : vector<1x32xf32> to vector<8x32xf32>
    %365 = arith.addf %362, %364 : vector<8x32xf32>
    %366 = math.tanh %365 : vector<8x32xf32>
    %367 = arith.truncf %366 : vector<8x32xf32> to vector<8x32xbf16>
    %c0_120 = arith.constant 0 : index
    %c0_121 = arith.constant 0 : index
    %368 = vector.load %arg12[%c0_120, %c0_121] : memref<32x128xbf16, #tpu.memory_space<vmem>>, vector<32x128xbf16>
    %cst_122 = arith.constant dense<0.000000e+00> : vector<8x128xf32>
    %369 = tpu.matmul %367, %368, %cst_122 {dimension_numbers = #tpu.dot_dimension_numbers<[1], [0], [0], [1], [0, 0, 1, 1], [], []>} : vector<8x32xbf16>, vector<32x128xbf16>, vector<8x128xf32> -> vector<8x128xf32>
    %c0_123 = arith.constant 0 : index
    %c0_124 = arith.constant 0 : index
    %370 = vector.load %arg13[%c0_123, %c0_124] : memref<1x128xf32, #tpu.memory_space<vmem>>, vector<1x128xf32>
    %371 = vector.broadcast %370 : vector<1x128xf32> to vector<8x128xf32>
    %372 = arith.addf %369, %371 : vector<8x128xf32>
    %373 = vector.extract_strided_slice %372 {offsets = [0, 0], sizes = [1, 128], strides = [1, 1]} : vector<8x128xf32> to vector<1x128xf32>
    %374 = vector.shape_cast %373 : vector<1x128xf32> to vector<1x1x128xf32>
    %c0_125 = arith.constant 0 : index
    %c0_126 = arith.constant 0 : index
    %c0_127 = arith.constant 0 : index
    %375 = vector.load %arg14[%c0_125, %c0_126, %c0_127] : memref<1x1x128xf32, #tpu.memory_space<vmem>>, vector<1x1x128xf32>
    tpu.vector_store %arg14[%c0_125, %c0_126, %c0_127], %374 {strides = array<i32>} : memref<1x1x128xf32, #tpu.memory_space<vmem>>, vector<1x1x128xf32>,
    return
  }
  func.func @transform_0(%arg0: i32) -> (i32, i32, i32) {
    %c0_i32 = arith.constant 0 : i32
    %c0_i32_0 = arith.constant 0 : i32
    %c0_i32_1 = arith.constant 0 : i32
    return %arg0, %c0_i32, %c0_i32_0 : i32, i32, i32
  }
  func.func @transform_1(%arg0: i32) -> (i32, i32, i32) {
    %c0_i32 = arith.constant 0 : i32
    %c0_i32_0 = arith.constant 0 : i32
    %c0_i32_1 = arith.constant 0 : i32
    return %arg0, %c0_i32, %c0_i32_0 : i32, i32, i32
  }
  func.func @transform_2(%arg0: i32) -> (i32, i32) {
    %c0_i32 = arith.constant 0 : i32
    %c0_i32_0 = arith.constant 0 : i32
    %c0_i32_1 = arith.constant 0 : i32
    return %c0_i32, %c0_i32_0 : i32, i32
  }
  func.func @transform_3(%arg0: i32) -> (i32, i32, i32) {
    %c0_i32 = arith.constant 0 : i32
    %c0_i32_0 = arith.constant 0 : i32
    %c0_i32_1 = arith.constant 0 : i32
    %c0_i32_2 = arith.constant 0 : i32
    return %c0_i32, %c0_i32_0, %c0_i32_1 : i32, i32, i32
  }
  func.func @transform_4(%arg0: i32) -> (i32, i32, i32) {
    %c0_i32 = arith.constant 0 : i32
    %c0_i32_0 = arith.constant 0 : i32
    %c0_i32_1 = arith.constant 0 : i32
    %c0_i32_2 = arith.constant 0 : i32
    return %c0_i32, %c0_i32_0, %c0_i32_1 : i32, i32, i32
  }
  func.func @transform_5(%arg0: i32) -> (i32, i32, i32) {
    %c0_i32 = arith.constant 0 : i32
    %c0_i32_0 = arith.constant 0 : i32
    %c0_i32_1 = arith.constant 0 : i32
    %c0_i32_2 = arith.constant 0 : i32
    return %c0_i32, %c0_i32_0, %c0_i32_1 : i32, i32, i32
  }
  func.func @transform_6(%arg0: i32) -> (i32, i32, i32) {
    %c0_i32 = arith.constant 0 : i32
    %c0_i32_0 = arith.constant 0 : i32
    %c0_i32_1 = arith.constant 0 : i32
    %c0_i32_2 = arith.constant 0 : i32
    return %c0_i32, %c0_i32_0, %c0_i32_1 : i32, i32, i32
  }
  func.func @transform_7(%arg0: i32) -> (i32, i32, i32) {
    %c0_i32 = arith.constant 0 : i32
    %c0_i32_0 = arith.constant 0 : i32
    %c0_i32_1 = arith.constant 0 : i32
    %c0_i32_2 = arith.constant 0 : i32
    return %c0_i32, %c0_i32_0, %c0_i32_1 : i32, i32, i32
  }
  func.func @transform_8(%arg0: i32) -> (i32, i32, i32) {
    %c0_i32 = arith.constant 0 : i32
    %c0_i32_0 = arith.constant 0 : i32
    %c0_i32_1 = arith.constant 0 : i32
    %c0_i32_2 = arith.constant 0 : i32
    return %c0_i32, %c0_i32_0, %c0_i32_1 : i32, i32, i32
  }
  func.func @transform_9(%arg0: i32) -> (i32, i32, i32) {
    %c0_i32 = arith.constant 0 : i32
    %c0_i32_0 = arith.constant 0 : i32
    %c0_i32_1 = arith.constant 0 : i32
    %c0_i32_2 = arith.constant 0 : i32
    return %c0_i32, %c0_i32_0, %c0_i32_1 : i32, i32, i32
  }
  func.func @transform_10(%arg0: i32) -> (i32, i32) {
    %c0_i32 = arith.constant 0 : i32
    %c0_i32_0 = arith.constant 0 : i32
    %c0_i32_1 = arith.constant 0 : i32
    return %c0_i32, %c0_i32_0 : i32, i32
  }
  func.func @transform_11(%arg0: i32) -> (i32, i32) {
    %c0_i32 = arith.constant 0 : i32
    %c0_i32_0 = arith.constant 0 : i32
    %c0_i32_1 = arith.constant 0 : i32
    return %c0_i32, %c0_i32_0 : i32, i32
  }
  func.func @transform_12(%arg0: i32) -> (i32, i32) {
    %c0_i32 = arith.constant 0 : i32
    %c0_i32_0 = arith.constant 0 : i32
    %c0_i32_1 = arith.constant 0 : i32
    return %c0_i32, %c0_i32_0 : i32, i32
  }
  func.func @transform_13(%arg0: i32) -> (i32, i32, i32) {
    %c0_i32 = arith.constant 0 : i32
    %c0_i32_0 = arith.constant 0 : i32
    %c0_i32_1 = arith.constant 0 : i32
    return %arg0, %c0_i32, %c0_i32_0 : i32, i32, i32
  }
}

</mosaic_0001>

<llo_original>
// kernel: transformer_model_forward.1
$region0: #{transformer_model_forward.1}
  #allocation0 [shape = 'u32[]', space=smem, size = 0x4, offset = 0x4, fixed_abs, tag = 'smem constant byte address 0x4 - core index']
  #allocation1 [shape = 'u32[144,128]{1,0:T(1,128)}', space=vmem, size = 0x12000, scoped, tag = 'internal scratch']
  %s0 = inlined_call_operand.vmem [shape: f32[2,8,32], index: 0, kind: input, shape index: {}]
  %s1 = inlined_call_operand.vmem [shape: f32[2,1,8], index: 1, kind: input, shape index: {}]
  %s2 = inlined_call_operand.vmem [shape: f32[3,32], index: 2, kind: input, shape index: {}]
  %s3 = inlined_call_operand.vmem [shape: bf16[2,32,96], index: 3, kind: input, shape index: {}]
  %s4 = inlined_call_operand.vmem [shape: f32[2,1,96], index: 4, kind: input, shape index: {}]
  %s5 = inlined_call_operand.vmem [shape: bf16[2,32,32], index: 5, kind: input, shape index: {}]
  %s6 = inlined_call_operand.vmem [shape: f32[2,6,32], index: 6, kind: input, shape index: {}]
  %s7 = inlined_call_operand.vmem [shape: bf16[2,32,64], index: 7, kind: input, shape index: {}]
  %s8 = inlined_call_operand.vmem [shape: f32[2,1,64], index: 8, kind: input, shape index: {}]
  %s9 = inlined_call_operand.vmem [shape: bf16[2,64,32], index: 9, kind: input, shape index: {}]
  %s10 = inlined_call_operand.vmem [shape: bf16[32,32], index: 10, kind: input, shape index: {}]
  %s11 = inlined_call_operand.vmem [shape: bf16[32,128], index: 11, kind: input, shape index: {}]
  %s12 = inlined_call_operand.vmem [shape: f32[1,128], index: 12, kind: input, shape index: {}]
  %s13 = inlined_call_operand.hbm [shape: f32[2,1,128], index: 13, kind: output, shape index: {}]
  %s14 = sld [smem:[#allocation0]]
  $region85: #{transformer_model_forward.1} parent=0
    _
  %s16 = ssub.s32 1, %s14
  %s17 = scalar_select 0, %s16, %s14
  $region1: #{transformer_model_forward.1} parent=0
    #allocation2 [shape = 'u8[1024]{0}', space=vmem, size = 0x400, scoped, tag = 'output window, operand 0']
    #allocation3 [shape = 's32[2]{0}', space=sflag, size = 0x8, scoped, tag = 'scoped memory for transformer_model_forward.1']
    %18 = vsyncpa [#allocation3], 0
    %s19 = scalar_lea.sflag [#allocation3], 1
    %20 = vsyncpa %s19, 0
    loop: start=0, step=1, limit=4
    $region2: #{transformer_model_forward.1} parent=1 // loop_pre_header
      _
    $region3: #{transformer_model_forward.1} parent=1 // loop_header
      %s22 = sphi 0, %s26
      %p23 = scmp.ge.s32.totalorder %s22, 4
      %s32 = sphi 0, %s34
      %s35 = sphi 0, %s32
      %s36 = sphi 0, %s35
      %s52 = sphi 0, %s36
      %s58 = sphi 0, %s60
      %s61 = sphi 0, %s58
      %s62 = sphi 0, %s61
      %s78 = sphi 0, %s62
      %s82 = sphi 0, %s82
      %s84 = sphi 0, %s82
      %s85 = sphi 0, %s84
      %s99 = sphi 0, %s85
      %s103 = sphi 0, %s103
      %s105 = sphi 0, %s103
      %s106 = sphi 0, %s105
      %s120 = sphi 0, %s106
      %s124 = sphi 0, %s124
      %s126 = sphi 0, %s124
      %s127 = sphi 0, %s126
      %s141 = sphi 0, %s127
      %s145 = sphi 0, %s145
      %s147 = sphi 0, %s145
      %s148 = sphi 0, %s147
      %s162 = sphi 0, %s148
      %s166 = sphi 0, %s166
      %s168 = sphi 0, %s166
      %s169 = sphi 0, %s168
      %s183 = sphi 0, %s169
      %s187 = sphi 0, %s187
      %s189 = sphi 0, %s187
      %s190 = sphi 0, %s189
      %s204 = sphi 0, %s190
      %s208 = sphi 0, %s208
      %s210 = sphi 0, %s208
      %s211 = sphi 0, %s210
      %s225 = sphi 0, %s211
      %s229 = sphi 0, %s229
      %s231 = sphi 0, %s229
      %s232 = sphi 0, %s231
      %s246 = sphi 0, %s232
      %s250 = sphi 0, %s250
      %s252 = sphi 0, %s250
      %s253 = sphi 0, %s252
      %s267 = sphi 0, %s253
      %s271 = sphi 0, %s271
      %s273 = sphi 0, %s271
      %s274 = sphi 0, %s273
      %s288 = sphi 0, %s274
      %s292 = sphi 0, %s292
      %s294 = sphi 0, %s292
      %s295 = sphi 0, %s294
      %s309 = sphi 0, %s295
      %s315 = sphi 0, %s317
      %s318 = sphi 0, %s315
      %s319 = sphi 0, %s318
      %s335 = sphi 0, %s319
    $region4: #{transformer_model_forward.1} parent=1 // loop_header_branch
      %25 = sbr.rel (%p23) target = $region8
    $region5: #{transformer_model_forward.1} parent=1 // loop_body
      %s27 = ssub.s32 %s22, 1
      %s28 = ssub.s32 %s22, 2
      %s29 = sadd.s32 %s22, 1
      %s30 = ssub.s32 %s22, %s29
      %p31 = scmp.eq.s32.totalorder %s30, 0
      %s33 = sadd.s32 %s32, 1
      %s34 = scalar_select %p31, %s32, %s33
      %p37 = pneg %p31
      %p38 = scmp.eq.s32.totalorder %s22, 1
      %p39 = por %p37, %p38
      %p40 = scmp.ne.s32.totalorder %s32, %s35
      %p41 = scmp.eq.s32.totalorder %s22, 0
      %p42 = por %p40, %p41
      %p43 = scmp.ne.s32.totalorder %s32, %s35
      %p44 = scmp.eq.s32.totalorder %s27, 1
      %p45 = por %p43, %p44
      %p46 = scmp.ne.s32.totalorder %s35, %s36
      %p47 = scmp.eq.s32.totalorder %s27, 0
      %p48 = por %p46, %p47
      %p49 = scmp.ne.s32.totalorder %s35, %s36
      %p50 = scmp.eq.s32.totalorder %s28, 1
      %p51 = por %p49, %p50
      %p53 = scmp.ne.s32.totalorder %s36, %s52
      %p54 = scmp.eq.s32.totalorder %s28, 0
      %p55 = por %p53, %p54
      %s56 = ssub.s32 %s22, %s29
      %p57 = scmp.eq.s32.totalorder %s56, 0
      %s59 = sadd.s32 %s58, 1
      %s60 = scalar_select %p57, %s58, %s59
      %p63 = pneg %p57
      %p64 = scmp.eq.s32.totalorder %s22, 1
      %p65 = por %p63, %p64
      %p66 = scmp.ne.s32.totalorder %s58, %s61
      %p67 = scmp.eq.s32.totalorder %s22, 0
      %p68 = por %p66, %p67
      %p69 = scmp.ne.s32.totalorder %s58, %s61
      %p70 = scmp.eq.s32.totalorder %s27, 1
      %p71 = por %p69, %p70
      %p72 = scmp.ne.s32.totalorder %s61, %s62
      %p73 = scmp.eq.s32.totalorder %s27, 0
      %p74 = por %p72, %p73
      %p75 = scmp.ne.s32.totalorder %s61, %s62
      %p76 = scmp.eq.s32.totalorder %s28, 1
      %p77 = por %p75, %p76
      %p79 = scmp.ne.s32.totalorder %s62, %s78
      %p80 = scmp.eq.s32.totalorder %s28, 0
      %p81 = por %p79, %p80
      %s83 = sadd.s32 %s82, 1
      %p86 = scmp.eq.s32.totalorder %s22, 1
      %p87 = scmp.ne.s32.totalorder %s82, %s84
      %p88 = scmp.eq.s32.totalorder %s22, 0
      %p89 = por %p87, %p88
      %p90 = scmp.ne.s32.totalorder %s82, %s84
      %p91 = scmp.eq.s32.totalorder %s27, 1
      %p92 = por %p90, %p91
      %p93 = scmp.ne.s32.totalorder %s84, %s85
      %p94 = scmp.eq.s32.totalorder %s27, 0
      %p95 = por %p93, %p94
      %p96 = scmp.ne.s32.totalorder %s84, %s85
      %p97 = scmp.eq.s32.totalorder %s28, 1
      %p98 = por %p96, %p97
      %p100 = scmp.ne.s32.totalorder %s85, %s99
      %p101 = scmp.eq.s32.totalorder %s28, 0
      %p102 = por %p100, %p101
      %s104 = sadd.s32 %s103, 1
      %p107 = scmp.eq.s32.totalorder %s22, 1
      %p108 = scmp.ne.s32.totalorder %s103, %s105
      %p109 = scmp.eq.s32.totalorder %s22, 0
      %p110 = por %p108, %p109
      %p111 = scmp.ne.s32.totalorder %s103, %s105
      %p112 = scmp.eq.s32.totalorder %s27, 1
      %p113 = por %p111, %p112
      %p114 = scmp.ne.s32.totalorder %s105, %s106
      %p115 = scmp.eq.s32.totalorder %s27, 0
      %p116 = por %p114, %p115
      %p117 = scmp.ne.s32.totalorder %s105, %s106
      %p118 = scmp.eq.s32.totalorder %s28, 1
      %p119 = por %p117, %p118
      %p121 = scmp.ne.s32.totalorder %s106, %s120
      %p122 = scmp.eq.s32.totalorder %s28, 0
      %p123 = por %p121, %p122
      %s125 = sadd.s32 %s124, 1
      %p128 = scmp.eq.s32.totalorder %s22, 1
      %p129 = scmp.ne.s32.totalorder %s124, %s126
      %p130 = scmp.eq.s32.totalorder %s22, 0
      %p131 = por %p129, %p130
      %p132 = scmp.ne.s32.totalorder %s124, %s126
      %p133 = scmp.eq.s32.totalorder %s27, 1
      %p134 = por %p132, %p133
      %p135 = scmp.ne.s32.totalorder %s126, %s127
      %p136 = scmp.eq.s32.totalorder %s27, 0
      %p137 = por %p135, %p136
      %p138 = scmp.ne.s32.totalorder %s126, %s127
      %p139 = scmp.eq.s32.totalorder %s28, 1
      %p140 = por %p138, %p139
      %p142 = scmp.ne.s32.totalorder %s127, %s141
      %p143 = scmp.eq.s32.totalorder %s28, 0
      %p144 = por %p142, %p143
      %s146 = sadd.s32 %s145, 1
      %p149 = scmp.eq.s32.totalorder %s22, 1
      %p150 = scmp.ne.s32.totalorder %s145, %s147
      %p151 = scmp.eq.s32.totalorder %s22, 0
      %p152 = por %p150, %p151
      %p153 = scmp.ne.s32.totalorder %s145, %s147
      %p154 = scmp.eq.s32.totalorder %s27, 1
      %p155 = por %p153, %p154
      %p156 = scmp.ne.s32.totalorder %s147, %s148
      %p157 = scmp.eq.s32.totalorder %s27, 0
      %p158 = por %p156, %p157
      %p159 = scmp.ne.s32.totalorder %s147, %s148
      %p160 = scmp.eq.s32.totalorder %s28, 1
      %p161 = por %p159, %p160
      %p163 = scmp.ne.s32.totalorder %s148, %s162
      %p164 = scmp.eq.s32.totalorder %s28, 0
      %p165 = por %p163, %p164
      %s167 = sadd.s32 %s166, 1
      %p170 = scmp.eq.s32.totalorder %s22, 1
      %p171 = scmp.ne.s32.totalorder %s166, %s168
      %p172 = scmp.eq.s32.totalorder %s22, 0
      %p173 = por %p171, %p172
      %p174 = scmp.ne.s32.totalorder %s166, %s168
      %p175 = scmp.eq.s32.totalorder %s27, 1
      %p176 = por %p174, %p175
      %p177 = scmp.ne.s32.totalorder %s168, %s169
      %p178 = scmp.eq.s32.totalorder %s27, 0
      %p179 = por %p177, %p178
      %p180 = scmp.ne.s32.totalorder %s168, %s169
      %p181 = scmp.eq.s32.totalorder %s28, 1
      %p182 = por %p180, %p181
      %p184 = scmp.ne.s32.totalorder %s169, %s183
      %p185 = scmp.eq.s32.totalorder %s28, 0
      %p186 = por %p184, %p185
      %s188 = sadd.s32 %s187, 1
      %p191 = scmp.eq.s32.totalorder %s22, 1
      %p192 = scmp.ne.s32.totalorder %s187, %s189
      %p193 = scmp.eq.s32.totalorder %s22, 0
      %p194 = por %p192, %p193
      %p195 = scmp.ne.s32.totalorder %s187, %s189
      %p196 = scmp.eq.s32.totalorder %s27, 1
      %p197 = por %p195, %p196
      %p198 = scmp.ne.s32.totalorder %s189, %s190
      %p199 = scmp.eq.s32.totalorder %s27, 0
      %p200 = por %p198, %p199
      %p201 = scmp.ne.s32.totalorder %s189, %s190
      %p202 = scmp.eq.s32.totalorder %s28, 1
      %p203 = por %p201, %p202
      %p205 = scmp.ne.s32.totalorder %s190, %s204
      %p206 = scmp.eq.s32.totalorder %s28, 0
      %p207 = por %p205, %p206
      %s209 = sadd.s32 %s208, 1
      %p212 = scmp.eq.s32.totalorder %s22, 1
      %p213 = scmp.ne.s32.totalorder %s208, %s210
      %p214 = scmp.eq.s32.totalorder %s22, 0
      %p215 = por %p213, %p214
      %p216 = scmp.ne.s32.totalorder %s208, %s210
      %p217 = scmp.eq.s32.totalorder %s27, 1
      %p218 = por %p216, %p217
      %p219 = scmp.ne.s32.totalorder %s210, %s211
      %p220 = scmp.eq.s32.totalorder %s27, 0
      %p221 = por %p219, %p220
      %p222 = scmp.ne.s32.totalorder %s210, %s211
      %p223 = scmp.eq.s32.totalorder %s28, 1
      %p224 = por %p222, %p223
      %p226 = scmp.ne.s32.totalorder %s211, %s225
      %p227 = scmp.eq.s32.totalorder %s28, 0
      %p228 = por %p226, %p227
      %s230 = sadd.s32 %s229, 1
      %p233 = scmp.eq.s32.totalorder %s22, 1
      %p234 = scmp.ne.s32.totalorder %s229, %s231
      %p235 = scmp.eq.s32.totalorder %s22, 0
      %p236 = por %p234, %p235
      %p237 = scmp.ne.s32.totalorder %s229, %s231
      %p238 = scmp.eq.s32.totalorder %s27, 1
      %p239 = por %p237, %p238
      %p240 = scmp.ne.s32.totalorder %s231, %s232
      %p241 = scmp.eq.s32.totalorder %s27, 0
      %p242 = por %p240, %p241
      %p243 = scmp.ne.s32.totalorder %s231, %s232
      %p244 = scmp.eq.s32.totalorder %s28, 1
      %p245 = por %p243, %p244
      %p247 = scmp.ne.s32.totalorder %s232, %s246
      %p248 = scmp.eq.s32.totalorder %s28, 0
      %p249 = por %p247, %p248
      %s251 = sadd.s32 %s250, 1
      %p254 = scmp.eq.s32.totalorder %s22, 1
      %p255 = scmp.ne.s32.totalorder %s250, %s252
      %p256 = scmp.eq.s32.totalorder %s22, 0
      %p257 = por %p255, %p256
      %p258 = scmp.ne.s32.totalorder %s250, %s252
      %p259 = scmp.eq.s32.totalorder %s27, 1
      %p260 = por %p258, %p259
      %p261 = scmp.ne.s32.totalorder %s252, %s253
      %p262 = scmp.eq.s32.totalorder %s27, 0
      %p263 = por %p261, %p262
      %p264 = scmp.ne.s32.totalorder %s252, %s253
      %p265 = scmp.eq.s32.totalorder %s28, 1
      %p266 = por %p264, %p265
      %p268 = scmp.ne.s32.totalorder %s253, %s267
      %p269 = scmp.eq.s32.totalorder %s28, 0
      %p270 = por %p268, %p269
      %s272 = sadd.s32 %s271, 1
      %p275 = scmp.eq.s32.totalorder %s22, 1
      %p276 = scmp.ne.s32.totalorder %s271, %s273
      %p277 = scmp.eq.s32.totalorder %s22, 0
      %p278 = por %p276, %p277
      %p279 = scmp.ne.s32.totalorder %s271, %s273
      %p280 = scmp.eq.s32.totalorder %s27, 1
      %p281 = por %p279, %p280
      %p282 = scmp.ne.s32.totalorder %s273, %s274
      %p283 = scmp.eq.s32.totalorder %s27, 0
      %p284 = por %p282, %p283
      %p285 = scmp.ne.s32.totalorder %s273, %s274
      %p286 = scmp.eq.s32.totalorder %s28, 1
      %p287 = por %p285, %p286
      %p289 = scmp.ne.s32.totalorder %s274, %s288
      %p290 = scmp.eq.s32.totalorder %s28, 0
      %p291 = por %p289, %p290
      %s293 = sadd.s32 %s292, 1
      %p296 = scmp.eq.s32.totalorder %s22, 1
      %p297 = scmp.ne.s32.totalorder %s292, %s294
      %p298 = scmp.eq.s32.totalorder %s22, 0
      %p299 = por %p297, %p298
      %p300 = scmp.ne.s32.totalorder %s292, %s294
      %p301 = scmp.eq.s32.totalorder %s27, 1
      %p302 = por %p300, %p301
      %p303 = scmp.ne.s32.totalorder %s294, %s295
      %p304 = scmp.eq.s32.totalorder %s27, 0
      %p305 = por %p303, %p304
      %p306 = scmp.ne.s32.totalorder %s294, %s295
      %p307 = scmp.eq.s32.totalorder %s28, 1
      %p308 = por %p306, %p307
      %p310 = scmp.ne.s32.totalorder %s295, %s309
      %p311 = scmp.eq.s32.totalorder %s28, 0
      %p312 = por %p310, %p311
      %s313 = ssub.s32 %s22, %s29
      %p314 = scmp.eq.s32.totalorder %s313, 0
      %s316 = sadd.s32 %s315, 1
      %s317 = scalar_select %p314, %s315, %s316
      %p320 = pneg %p314
      %p321 = scmp.eq.s32.totalorder %s22, 1
      %p322 = por %p320, %p321
      %p323 = scmp.ne.s32.totalorder %s315, %s318
      %p324 = scmp.eq.s32.totalorder %s22, 0
      %p325 = por %p323, %p324
      %p326 = scmp.ne.s32.totalorder %s315, %s318
      %p327 = scmp.eq.s32.totalorder %s27, 1
      %p328 = por %p326, %p327
      %p329 = scmp.ne.s32.totalorder %s318, %s319
      %p330 = scmp.eq.s32.totalorder %s27, 0
      %p331 = por %p329, %p330
      %p332 = scmp.ne.s32.totalorder %s318, %s319
      %p333 = scmp.eq.s32.totalorder %s28, 1
      %p334 = por %p332, %p333
      %p336 = scmp.ne.s32.totalorder %s319, %s335
      %p337 = scmp.eq.s32.totalorder %s28, 0
      %p338 = por %p336, %p337
      %p339 = scmp.le.s32.totalorder 1, %s22
      %p340 = scmp.lt.s32.totalorder %s22, 3
      %p341 = pnand %p339, %p340
      %p342 = pneg %p341
      // Predicated region
      $region9: #{transformer_model_forward.1} parent=5 // pred_check
        _
      $region10: #{transformer_model_forward.1} parent=5 // pred_check_branch
        %344 = sbr.rel (%p341) target = $region12
      $region11: #{transformer_model_forward.1} parent=5 // pred_region
        %s345 = ssub.s32 %s22, 1
        // Predicated region
        $region13: #{transformer_model_forward.1} parent=11 // pred_check
          %p346 = pneg %p95
        $region14: #{transformer_model_forward.1} parent=11 // pred_check_branch
          %348 = sbr.rel (%p346) target = $region16
        $region15: #{transformer_model_forward.1} parent=11 // pred_region
          _
        $region16: #{transformer_model_forward.1} parent=11 // pred_fallthru
          _
        // Predicated region
        $region17: #{transformer_model_forward.1} parent=11 // pred_check
          %p349 = pneg %p116
        $region18: #{transformer_model_forward.1} parent=11 // pred_check_branch
          %351 = sbr.rel (%p349) target = $region20
        $region19: #{transformer_model_forward.1} parent=11 // pred_region
          _
        $region20: #{transformer_model_forward.1} parent=11 // pred_fallthru
          _
        // Predicated region
        $region21: #{transformer_model_forward.1} parent=11 // pred_check
          %p352 = pneg %p137
        $region22: #{transformer_model_forward.1} parent=11 // pred_check_branch
          %354 = sbr.rel (%p352) target = $region24
        $region23: #{transformer_model_forward.1} parent=11 // pred_region
          _
        $region24: #{transformer_model_forward.1} parent=11 // pred_fallthru
          _
        // Predicated region
        $region25: #{transformer_model_forward.1} parent=11 // pred_check
          %p355 = pneg %p158
        $region26: #{transformer_model_forward.1} parent=11 // pred_check_branch
          %357 = sbr.rel (%p355) target = $region28
        $region27: #{transformer_model_forward.1} parent=11 // pred_region
          _
        $region28: #{transformer_model_forward.1} parent=11 // pred_fallthru
          _
        // Predicated region
        $region29: #{transformer_model_forward.1} parent=11 // pred_check
          %p358 = pneg %p179
        $region30: #{transformer_model_forward.1} parent=11 // pred_check_branch
          %360 = sbr.rel (%p358) target = $region32
        $region31: #{transformer_model_forward.1} parent=11 // pred_region
          _
        $region32: #{transformer_model_forward.1} parent=11 // pred_fallthru
          _
        // Predicated region
        $region33: #{transformer_model_forward.1} parent=11 // pred_check
          %p361 = pneg %p200
        $region34: #{transformer_model_forward.1} parent=11 // pred_check_branch
          %363 = sbr.rel (%p361) target = $region36
        $region35: #{transformer_model_forward.1} parent=11 // pred_region
          _
        $region36: #{transformer_model_forward.1} parent=11 // pred_fallthru
          _
        // Predicated region
        $region37: #{transformer_model_forward.1} parent=11 // pred_check
          %p364 = pneg %p221
        $region38: #{transformer_model_forward.1} parent=11 // pred_check_branch
          %366 = sbr.rel (%p364) target = $region40
        $region39: #{transformer_model_forward.1} parent=11 // pred_region
          _
        $region40: #{transformer_model_forward.1} parent=11 // pred_fallthru
          _
        // Predicated region
        $region41: #{transformer_model_forward.1} parent=11 // pred_check
          %p367 = pneg %p242
        $region42: #{transformer_model_forward.1} parent=11 // pred_check_branch
          %369 = sbr.rel (%p367) target = $region44
        $region43: #{transformer_model_forward.1} parent=11 // pred_region
          _
        $region44: #{transformer_model_forward.1} parent=11 // pred_fallthru
          _
        // Predicated region
        $region45: #{transformer_model_forward.1} parent=11 // pred_check
          %p370 = pneg %p263
        $region46: #{transformer_model_forward.1} parent=11 // pred_check_branch
          %372 = sbr.rel (%p370) target = $region48
        $region47: #{transformer_model_forward.1} parent=11 // pred_region
          _
        $region48: #{transformer_model_forward.1} parent=11 // pred_fallthru
          _
        // Predicated region
        $region49: #{transformer_model_forward.1} parent=11 // pred_check
          %p373 = pneg %p284
        $region50: #{transformer_model_forward.1} parent=11 // pred_check_branch
          %375 = sbr.rel (%p373) target = $region52
        $region51: #{transformer_model_forward.1} parent=11 // pred_region
          _
        $region52: #{transformer_model_forward.1} parent=11 // pred_fallthru
          _
        // Predicated region
        $region53: #{transformer_model_forward.1} parent=11 // pred_check
          %p376 = pneg %p305
        $region54: #{transformer_model_forward.1} parent=11 // pred_check_branch
          %378 = sbr.rel (%p376) target = $region56
        $region55: #{transformer_model_forward.1} parent=11 // pred_region
          _
        $region56: #{transformer_model_forward.1} parent=11 // pred_fallthru
          _
      $region12: #{transformer_model_forward.1} parent=5 // pred_fallthru
        _
      %p379 = scmp.lt.s32.totalorder %s22, 2
      // Predicated region
      $region57: #{transformer_model_forward.1} parent=5 // pred_check
        %p380 = pneg %p379
      $region58: #{transformer_model_forward.1} parent=5 // pred_check_branch
        %382 = sbr.rel (%p380) target = $region60
      $region59: #{transformer_model_forward.1} parent=5 // pred_region
        // Predicated region
        $region61: #{transformer_model_forward.1} parent=59 // pred_check
          %p383 = pneg %p42
        $region62: #{transformer_model_forward.1} parent=59 // pred_check_branch
          %385 = sbr.rel (%p383) target = $region64
        $region63: #{transformer_model_forward.1} parent=59 // pred_region
          %p386 = scmp.lt.s32.totalorder %s22, 1
          %s387 = scalar_select %p386, %s22, 1
          %s388 = smul.addr %s387, 8
          %s389 = scalar_lea.vmem %s0, %s388
        $region64: #{transformer_model_forward.1} parent=59 // pred_fallthru
          _
        // Predicated region
        $region65: #{transformer_model_forward.1} parent=59 // pred_check
          %p390 = pneg %p68
        $region66: #{transformer_model_forward.1} parent=59 // pred_check_branch
          %392 = sbr.rel (%p390) target = $region68
        $region67: #{transformer_model_forward.1} parent=59 // pred_region
          %p393 = scmp.lt.s32.totalorder %s22, 1
          %s394 = scalar_select %p393, %s22, 1
          %s395 = scalar_lea.vmem %s1, %s394
        $region68: #{transformer_model_forward.1} parent=59 // pred_fallthru
          _
      $region60: #{transformer_model_forward.1} parent=5 // pred_fallthru
        _
      %p396 = scmp.le.s32.totalorder 1, %s22
      %p397 = scmp.lt.s32.totalorder %s22, 3
      %p398 = pnand %p396, %p397
      %p399 = pneg %p398
      // Predicated region
      $region69: #{transformer_model_forward.1} parent=5 // pred_check
        _
      $region70: #{transformer_model_forward.1} parent=5 // pred_check_branch
        %401 = sbr.rel (%p398) target = $region72
      $region71: #{transformer_model_forward.1} parent=5 // pred_region
        %s402 = ssub.s32 %s22, 1
        %p403 = scmp.lt.s32.totalorder %s27, 1
        %s404 = scalar_select %p403, %s27, 1
        %s405 = smul.addr %s404, 8
        %s406 = scalar_lea.vmem %s0, %s405
        %p407 = pneg %p48
        %p408 = pneg %p45
        %p409 = scmp.lt.s32.totalorder %s27, 1
        %s410 = scalar_select %p409, %s27, 1
        %s411 = scalar_lea.vmem %s1, %s410
        %p412 = pneg %p74
        %p413 = pneg %p71
        %p414 = pneg %p95
        %p415 = pneg %p92
        %p416 = pneg %p116
        %p417 = pneg %p113
        %p418 = pneg %p137
        %p419 = pneg %p134
        %p420 = pneg %p158
        %p421 = pneg %p155
        %p422 = pneg %p179
        %p423 = pneg %p176
        %p424 = pneg %p200
        %p425 = pneg %p197
        %p426 = pneg %p221
        %p427 = pneg %p218
        %p428 = pneg %p242
        %p429 = pneg %p239
        %p430 = pneg %p263
        %p431 = pneg %p260
        %p432 = pneg %p284
        %p433 = pneg %p281
        %p434 = pneg %p305
        %p435 = pneg %p302
        %p436 = pneg %p331
        %p437 = pneg %p328
        %s438 = sand.u32 %s318, 1
        %s439 = scalar_lea.sflag [#allocation3], %s438
        %s440 = sand.u32 %s318, 1
        %s441 = scalar_lea.vmem [#allocation2], %s440
        %p442 = scmp.lt.s32.totalorder %s27, 1
        %s443 = scalar_select %p442, %s27, 1
        %s444 = smul.addr %s443, 8
        %s445 = scalar_lea.vmem %s0, %s444
        %p446 = scmp.lt.s32.totalorder %s27, 1
        %s447 = scalar_select %p446, %s27, 1
        %s448 = scalar_lea.vmem %s1, %s447
        %v450 = vld [vmem:[%s2] sm:$0x7]
        %v451 = vld [vmem:[%s6] sm:$0x3f]
        %v452 = vld [vmem:[%s6 + $0x8] sm:$0x3f]
        %v453 = vld [vmem:[%s448] sm:$0x1]
        %v454 = vld [vmem:[%s445] sm:$0xff]
        %vm455 = vcmask 261120
        %v456 = vsel %vm455, %v454, 0.0
        %457 = vadd.xlane.f32.xlu0 %v456
        %v458 = vpop.xlane.xlu0 %457
        %v459 = vrcp.pop 32.0
        %v460 = vmul.f32 %v458, %v459
        %v461 = vsub.f32 %v454, %v460
        %v462 = vmul.f32 %v461, %v461
        %v463 = vsel %vm455, %v462, 0.0
        %464 = vadd.xlane.f32.xlu0 %v463
        %v465 = vpop.xlane.xlu0 %464
        %v466 = vmul.f32 %v465, %v459
        %v467 = vadd.f32 %v466, 1e-12
        %v468 = vrsqrt.pop %v467
        %v469 = vmul.f32 %v461, %v468
        %v470 = vlaneseq
        %v471 = vshrl.u32 %v470, 7
        %v472 = vsub.s32 0, %v471
        %v473 = vrot.slane %v450, %v472
        %v474 = vmul.f32 %v469, %v473
        %v475 = vlaneseq
        %v476 = vshrl.u32 %v475, 7
        %v477 = vsub.s32 1, %v476
        %v478 = vrot.slane %v450, %v477
        %v479 = vadd.f32 %v474, %v478
        %v480 = vpack.c.bf16 %v479, %v479
        %v481 = vld [vmem:[%s3] sm:$0xf]
        %v482 = vld [vmem:[%s3 + $0x4] sm:$0xf]
        %v483 = vld [vmem:[%s3 + $0x8] sm:$0xf]
        %v484 = vld [vmem:[%s3 + $0xc] sm:$0xf]
        %v485 = vld [vmem:[%s4] sm:$0x1]
        %v487 = vlaneseq
        %v488 = vshrl.u32 %v487, 7
        %v489 = vsub.s32 0, %v488
        %v490 = vrot.slane %v485, %v489
        %v496 = vunpack.c.l.b16 %v481
        %v497 = vunpack.c.l.b16 %v482
        %v498 = vunpack.c.l.b16 %v483
        %v499 = vunpack.c.l.b16 %v484
        %v500 = vpack.c.b16 %v497, %v496
        %v501 = vpack.c.b16 %v499, %v498
        %v505 = vsel %vm455, %v480, 0
        %507 = vmatprep.subr.bf16.mxu0 0
        %508 = vmatpush1.bf16.msra.mxu0 0
        %509 = vmatprep.subr.bf16.mxu0 0
        %510 = vmatpush1.bf16.msra.mxu0 0
        %511 = vmatprep.subr.bf16.mxu0 0
        %512 = vmatpush1.bf16.msra.mxu0 0
        %513 = vmatprep.subr.bf16.mxu0 0
        %514 = vmatpush1.bf16.msra.mxu0 0
        %515 = vmatprep.subr.bf16.mxu0 0
        %516 = vmatpush1.bf16.msra.mxu0 0
        %517 = vmatprep.subr.bf16.mxu0 0
        %518 = vmatpush1.bf16.msra.mxu0 0
        %519 = vmatprep.subr.bf16.mxu0 0
        %520 = vmatpush1.bf16.msra.mxu0 %v501
        %521 = vmatprep.subr.bf16.mxu0 0
        %522 = vmatpush1.bf16.msra.mxu0 %v500
        %523 = vmatprep.subr.bf16.mxu0 0
        %524 = vmatpush2.bf16.msra.mxu0 0
        %525 = vmatprep.subr.bf16.mxu0 0
        %526 = vmatpush2.bf16.msra.mxu0 0
        %527 = vmatprep.subr.bf16.mxu0 0
        %528 = vmatpush2.bf16.msra.mxu0 0
        %529 = vmatprep.subr.bf16.mxu0 0
        %530 = vmatpush2.bf16.msra.mxu0 0
        %531 = vmatprep.subr.bf16.mxu0 0
        %532 = vmatpush2.bf16.msra.mxu0 0
        %533 = vmatprep.subr.bf16.mxu0 0
        %534 = vmatpush2.bf16.msra.mxu0 0
        %535 = vmatprep.subr.bf16.mxu0 0
        %536 = vmatpush2.bf16.msra.mxu0 0
        %537 = vmatprep.subr.bf16.mxu0 0
        %538 = vmatpush2.bf16.msra.mxu0 0
        %539 = vmatprep.mubr.bf16.mxu0 0
        %540 = vmatmul.mubr.bf16.gmra.mxu0 %v505
        %v541 = vpop.f32.mrf.mxu0
        %v542 = vadd.f32 %v490, %v541
        %v543 = vpop.f32.mrf.mxu0
        %v544 = vpop.f32.mrf.mxu0
        %v545 = vpop.f32.mrf.mxu0
        %546 = vdwg.mxu0
        %v547 = vpack.c.bf16 %v542, %v542
        %v549 = vlaneseq
        %v550 = vshrl.u32 %v549, 7
        %v551 = vsub.s32 0, %v550
        %v552 = vrot.slane %v453, %v551
        %555 = vrot.lane.b32.xlu0 %v547, 96
        %v556 = vpop.permute.xlu0 %555
        %vm557 = vcmask 64512
        %v559 = vsel %vm557, %v547, 0
        %v562 = vsel %vm557, %v556, 0
        %564 = vmatprep.subr.bf16.mxu0 0
        %565 = vmatpush1.bf16.xpose.msra.mxu0 0
        %566 = vmatprep.subr.bf16.mxu0 0
        %567 = vmatpush1.bf16.xpose.msra.mxu0 0
        %568 = vmatprep.subr.bf16.mxu0 0
        %569 = vmatpush1.bf16.xpose.msra.mxu0 0
        %570 = vmatprep.subr.bf16.mxu0 0
        %571 = vmatpush1.bf16.xpose.msra.mxu0 0
        %572 = vmatprep.subr.bf16.mxu0 0
        %573 = vmatpush1.bf16.xpose.msra.mxu0 0
        %574 = vmatprep.subr.bf16.mxu0 0
        %575 = vmatpush1.bf16.xpose.msra.mxu0 0
        %576 = vmatprep.subr.bf16.mxu0 0
        %577 = vmatpush1.bf16.xpose.msra.mxu0 0
        %578 = vmatprep.subr.bf16.mxu0 0
        %579 = vmatpush1.bf16.xpose.msra.mxu0 %v562
        %580 = vmatprep.subr.bf16.mxu0 0
        %581 = vmatpush2.bf16.xpose.msra.mxu0 0
        %582 = vmatprep.subr.bf16.mxu0 0
        %583 = vmatpush2.bf16.xpose.msra.mxu0 0
        %584 = vmatprep.subr.bf16.mxu0 0
        %585 = vmatpush2.bf16.xpose.msra.mxu0 0
        %586 = vmatprep.subr.bf16.mxu0 0
        %587 = vmatpush2.bf16.xpose.msra.mxu0 0
        %588 = vmatprep.subr.bf16.mxu0 0
        %589 = vmatpush2.bf16.xpose.msra.mxu0 0
        %590 = vmatprep.subr.bf16.mxu0 0
        %591 = vmatpush2.bf16.xpose.msra.mxu0 0
        %592 = vmatprep.subr.bf16.mxu0 0
        %593 = vmatpush2.bf16.xpose.msra.mxu0 0
        %594 = vmatprep.subr.bf16.mxu0 0
        %595 = vmatpush2.bf16.xpose.msra.mxu0 0
        %596 = vmatprep.mubr.bf16.mxu0 0
        %597 = vmatmul.mubr.bf16.gmra.mxu0 %v559
        %v598 = vpop.f32.mrf.mxu0
        %v599 = vadd.f32 %v552, %v598
        %v600 = vpop.f32.mrf.mxu0
        %v601 = vpop.f32.mrf.mxu0
        %v602 = vpop.f32.mrf.mxu0
        %603 = vdwg.mxu0
        %v604 = vsel %vm557, %v599, -inf
        %605 = vmax.xlane.f32.xlu0 %v604
        %v606 = vpop.xlane.xlu0 %605
        %v607 = vsub.f32 %v599, %v606
        %v608 = vmul.f32 %v607, 1.442695
        %v609 = vpow.pop %v608
        %v610 = vsel %vm557, %v609, 0.0
        %611 = vadd.xlane.f32.xlu0 %v610
        %v612 = vpop.xlane.xlu0 %611
        %v613 = vrcp.pop %v612
        %v614 = vmul.f32 %v609, %v613
        %v615 = vpack.c.bf16 %v614, %v614
        %616 = vrot.lane.b32.xlu0 %v547, 64
        %v617 = vpop.permute.xlu0 %616
        %v619 = vsel %vm557, %v615, 0
        %vm621 = vcmask 1043456
        %v623 = vsel %vm621, %v617, 0
        %625 = vmatprep.subr.bf16.mxu0 0
        %626 = vmatpush1.bf16.msra.mxu0 0
        %627 = vmatprep.subr.bf16.mxu0 0
        %628 = vmatpush1.bf16.msra.mxu0 0
        %629 = vmatprep.subr.bf16.mxu0 0
        %630 = vmatpush1.bf16.msra.mxu0 0
        %631 = vmatprep.subr.bf16.mxu0 0
        %632 = vmatpush1.bf16.msra.mxu0 0
        %633 = vmatprep.subr.bf16.mxu0 0
        %634 = vmatpush1.bf16.msra.mxu0 0
        %635 = vmatprep.subr.bf16.mxu0 0
        %636 = vmatpush1.bf16.msra.mxu0 0
        %637 = vmatprep.subr.bf16.mxu0 0
        %638 = vmatpush1.bf16.msra.mxu0 0
        %639 = vmatprep.subr.bf16.mxu0 0
        %640 = vmatpush1.bf16.msra.mxu0 %v623
        %641 = vmatprep.subr.bf16.mxu0 0
        %642 = vmatpush2.bf16.msra.mxu0 0
        %643 = vmatprep.subr.bf16.mxu0 0
        %644 = vmatpush2.bf16.msra.mxu0 0
        %645 = vmatprep.subr.bf16.mxu0 0
        %646 = vmatpush2.bf16.msra.mxu0 0
        %647 = vmatprep.subr.bf16.mxu0 0
        %648 = vmatpush2.bf16.msra.mxu0 0
        %649 = vmatprep.subr.bf16.mxu0 0
        %650 = vmatpush2.bf16.msra.mxu0 0
        %651 = vmatprep.subr.bf16.mxu0 0
        %652 = vmatpush2.bf16.msra.mxu0 0
        %653 = vmatprep.subr.bf16.mxu0 0
        %654 = vmatpush2.bf16.msra.mxu0 0
        %655 = vmatprep.subr.bf16.mxu0 0
        %656 = vmatpush2.bf16.msra.mxu0 0
        %657 = vmatprep.mubr.bf16.mxu0 0
        %658 = vmatmul.mubr.bf16.gmra.mxu0 %v619
        %v659 = vpop.f32.mrf.mxu0
        %v660 = vadd.f32 0.0, %v659
        %v661 = vpop.f32.mrf.mxu0
        %v662 = vpop.f32.mrf.mxu0
        %v663 = vpop.f32.mrf.mxu0
        %664 = vdwg.mxu0
        %665 = vrot.lane.b32.xlu0 %v547, 120
        %v666 = vpop.permute.xlu0 %665
        %667 = vrot.lane.b32.xlu0 %v547, 88
        %v668 = vpop.permute.xlu0 %667
        %v670 = vsel %vm557, %v666, 0
        %v673 = vsel %vm557, %v668, 0
        %675 = vmatprep.subr.bf16.mxu0 0
        %676 = vmatpush1.bf16.xpose.msra.mxu0 0
        %677 = vmatprep.subr.bf16.mxu0 0
        %678 = vmatpush1.bf16.xpose.msra.mxu0 0
        %679 = vmatprep.subr.bf16.mxu0 0
        %680 = vmatpush1.bf16.xpose.msra.mxu0 0
        %681 = vmatprep.subr.bf16.mxu0 0
        %682 = vmatpush1.bf16.xpose.msra.mxu0 0
        %683 = vmatprep.subr.bf16.mxu0 0
        %684 = vmatpush1.bf16.xpose.msra.mxu0 0
        %685 = vmatprep.subr.bf16.mxu0 0
        %686 = vmatpush1.bf16.xpose.msra.mxu0 0
        %687 = vmatprep.subr.bf16.mxu0 0
        %688 = vmatpush1.bf16.xpose.msra.mxu0 0
        %689 = vmatprep.subr.bf16.mxu0 0
        %690 = vmatpush1.bf16.xpose.msra.mxu0 %v673
        %691 = vmatprep.subr.bf16.mxu0 0
        %692 = vmatpush2.bf16.xpose.msra.mxu0 0
        %693 = vmatprep.subr.bf16.mxu0 0
        %694 = vmatpush2.bf16.xpose.msra.mxu0 0
        %695 = vmatprep.subr.bf16.mxu0 0
        %696 = vmatpush2.bf16.xpose.msra.mxu0 0
        %697 = vmatprep.subr.bf16.mxu0 0
        %698 = vmatpush2.bf16.xpose.msra.mxu0 0
        %699 = vmatprep.subr.bf16.mxu0 0
        %700 = vmatpush2.bf16.xpose.msra.mxu0 0
        %701 = vmatprep.subr.bf16.mxu0 0
        %702 = vmatpush2.bf16.xpose.msra.mxu0 0
        %703 = vmatprep.subr.bf16.mxu0 0
        %704 = vmatpush2.bf16.xpose.msra.mxu0 0
        %705 = vmatprep.subr.bf16.mxu0 0
        %706 = vmatpush2.bf16.xpose.msra.mxu0 0
        %707 = vmatprep.mubr.bf16.mxu0 0
        %708 = vmatmul.mubr.bf16.gmra.mxu0 %v670
        %v709 = vpop.f32.mrf.mxu0
        %v710 = vadd.f32 %v552, %v709
        %v711 = vpop.f32.mrf.mxu0
        %v712 = vpop.f32.mrf.mxu0
        %v713 = vpop.f32.mrf.mxu0
        %714 = vdwg.mxu0
        %v715 = vsel %vm557, %v710, -inf
        %716 = vmax.xlane.f32.xlu0 %v715
        %v717 = vpop.xlane.xlu0 %716
        %v718 = vsub.f32 %v710, %v717
        %v719 = vmul.f32 %v718, 1.442695
        %v720 = vpow.pop %v719
        %v721 = vsel %vm557, %v720, 0.0
        %722 = vadd.xlane.f32.xlu0 %v721
        %v723 = vpop.xlane.xlu0 %722
        %v724 = vrcp.pop %v723
        %v725 = vmul.f32 %v720, %v724
        %v726 = vpack.c.bf16 %v725, %v725
        %727 = vrot.lane.b32.xlu0 %v547, 56
        %v728 = vpop.permute.xlu0 %727
        %v730 = vsel %vm557, %v726, 0
        %v733 = vsel %vm621, %v728, 0
        %735 = vmatprep.subr.bf16.mxu0 0
        %736 = vmatpush1.bf16.msra.mxu0 0
        %737 = vmatprep.subr.bf16.mxu0 0
        %738 = vmatpush1.bf16.msra.mxu0 0
        %739 = vmatprep.subr.bf16.mxu0 0
        %740 = vmatpush1.bf16.msra.mxu0 0
        %741 = vmatprep.subr.bf16.mxu0 0
        %742 = vmatpush1.bf16.msra.mxu0 0
        %743 = vmatprep.subr.bf16.mxu0 0
        %744 = vmatpush1.bf16.msra.mxu0 0
        %745 = vmatprep.subr.bf16.mxu0 0
        %746 = vmatpush1.bf16.msra.mxu0 0
        %747 = vmatprep.subr.bf16.mxu0 0
        %748 = vmatpush1.bf16.msra.mxu0 0
        %749 = vmatprep.subr.bf16.mxu0 0
        %750 = vmatpush1.bf16.msra.mxu0 %v733
        %751 = vmatprep.subr.bf16.mxu0 0
        %752 = vmatpush2.bf16.msra.mxu0 0
        %753 = vmatprep.subr.bf16.mxu0 0
        %754 = vmatpush2.bf16.msra.mxu0 0
        %755 = vmatprep.subr.bf16.mxu0 0
        %756 = vmatpush2.bf16.msra.mxu0 0
        %757 = vmatprep.subr.bf16.mxu0 0
        %758 = vmatpush2.bf16.msra.mxu0 0
        %759 = vmatprep.subr.bf16.mxu0 0
        %760 = vmatpush2.bf16.msra.mxu0 0
        %761 = vmatprep.subr.bf16.mxu0 0
        %762 = vmatpush2.bf16.msra.mxu0 0
        %763 = vmatprep.subr.bf16.mxu0 0
        %764 = vmatpush2.bf16.msra.mxu0 0
        %765 = vmatprep.subr.bf16.mxu0 0
        %766 = vmatpush2.bf16.msra.mxu0 0
        %767 = vmatprep.mubr.bf16.mxu0 0
        %768 = vmatmul.mubr.bf16.gmra.mxu0 %v730
        %v769 = vpop.f32.mrf.mxu0
        %v770 = vadd.f32 0.0, %v769
        %v771 = vpop.f32.mrf.mxu0
        %v772 = vpop.f32.mrf.mxu0
        %v773 = vpop.f32.mrf.mxu0
        %774 = vdwg.mxu0
        %775 = vrot.lane.b32.xlu0 %v547, 112
        %v776 = vpop.permute.xlu0 %775
        %777 = vrot.lane.b32.xlu0 %v547, 80
        %v778 = vpop.permute.xlu0 %777
        %v780 = vsel %vm557, %v776, 0
        %v783 = vsel %vm557, %v778, 0
        %785 = vmatprep.subr.bf16.mxu0 0
        %786 = vmatpush1.bf16.xpose.msra.mxu0 0
        %787 = vmatprep.subr.bf16.mxu0 0
        %788 = vmatpush1.bf16.xpose.msra.mxu0 0
        %789 = vmatprep.subr.bf16.mxu0 0
        %790 = vmatpush1.bf16.xpose.msra.mxu0 0
        %791 = vmatprep.subr.bf16.mxu0 0
        %792 = vmatpush1.bf16.xpose.msra.mxu0 0
        %793 = vmatprep.subr.bf16.mxu0 0
        %794 = vmatpush1.bf16.xpose.msra.mxu0 0
        %795 = vmatprep.subr.bf16.mxu0 0
        %796 = vmatpush1.bf16.xpose.msra.mxu0 0
        %797 = vmatprep.subr.bf16.mxu0 0
        %798 = vmatpush1.bf16.xpose.msra.mxu0 0
        %799 = vmatprep.subr.bf16.mxu0 0
        %800 = vmatpush1.bf16.xpose.msra.mxu0 %v783
        %801 = vmatprep.subr.bf16.mxu0 0
        %802 = vmatpush2.bf16.xpose.msra.mxu0 0
        %803 = vmatprep.subr.bf16.mxu0 0
        %804 = vmatpush2.bf16.xpose.msra.mxu0 0
        %805 = vmatprep.subr.bf16.mxu0 0
        %806 = vmatpush2.bf16.xpose.msra.mxu0 0
        %807 = vmatprep.subr.bf16.mxu0 0
        %808 = vmatpush2.bf16.xpose.msra.mxu0 0
        %809 = vmatprep.subr.bf16.mxu0 0
        %810 = vmatpush2.bf16.xpose.msra.mxu0 0
        %811 = vmatprep.subr.bf16.mxu0 0
        %812 = vmatpush2.bf16.xpose.msra.mxu0 0
        %813 = vmatprep.subr.bf16.mxu0 0
        %814 = vmatpush2.bf16.xpose.msra.mxu0 0
        %815 = vmatprep.subr.bf16.mxu0 0
        %816 = vmatpush2.bf16.xpose.msra.mxu0 0
        %817 = vmatprep.mubr.bf16.mxu0 0
        %818 = vmatmul.mubr.bf16.gmra.mxu0 %v780
        %v819 = vpop.f32.mrf.mxu0
        %v820 = vadd.f32 %v552, %v819
        %v821 = vpop.f32.mrf.mxu0
        %v822 = vpop.f32.mrf.mxu0
        %v823 = vpop.f32.mrf.mxu0
        %824 = vdwg.mxu0
        %v825 = vsel %vm557, %v820, -inf
        %826 = vmax.xlane.f32.xlu0 %v825
        %v827 = vpop.xlane.xlu0 %826
        %v828 = vsub.f32 %v820, %v827
        %v829 = vmul.f32 %v828, 1.442695
        %v830 = vpow.pop %v829
        %v831 = vsel %vm557, %v830, 0.0
        %832 = vadd.xlane.f32.xlu0 %v831
        %v833 = vpop.xlane.xlu0 %832
        %v834 = vrcp.pop %v833
        %v835 = vmul.f32 %v830, %v834
        %v836 = vpack.c.bf16 %v835, %v835
        %837 = vrot.lane.b32.xlu0 %v547, 48
        %v838 = vpop.permute.xlu0 %837
        %v840 = vsel %vm557, %v836, 0
        %v843 = vsel %vm621, %v838, 0
        %845 = vmatprep.subr.bf16.mxu0 0
        %846 = vmatpush1.bf16.msra.mxu0 0
        %847 = vmatprep.subr.bf16.mxu0 0
        %848 = vmatpush1.bf16.msra.mxu0 0
        %849 = vmatprep.subr.bf16.mxu0 0
        %850 = vmatpush1.bf16.msra.mxu0 0
        %851 = vmatprep.subr.bf16.mxu0 0
        %852 = vmatpush1.bf16.msra.mxu0 0
        %853 = vmatprep.subr.bf16.mxu0 0
        %854 = vmatpush1.bf16.msra.mxu0 0
        %855 = vmatprep.subr.bf16.mxu0 0
        %856 = vmatpush1.bf16.msra.mxu0 0
        %857 = vmatprep.subr.bf16.mxu0 0
        %858 = vmatpush1.bf16.msra.mxu0 0
        %859 = vmatprep.subr.bf16.mxu0 0
        %860 = vmatpush1.bf16.msra.mxu0 %v843
        %861 = vmatprep.subr.bf16.mxu0 0
        %862 = vmatpush2.bf16.msra.mxu0 0
        %863 = vmatprep.subr.bf16.mxu0 0
        %864 = vmatpush2.bf16.msra.mxu0 0
        %865 = vmatprep.subr.bf16.mxu0 0
        %866 = vmatpush2.bf16.msra.mxu0 0
        %867 = vmatprep.subr.bf16.mxu0 0
        %868 = vmatpush2.bf16.msra.mxu0 0
        %869 = vmatprep.subr.bf16.mxu0 0
        %870 = vmatpush2.bf16.msra.mxu0 0
        %871 = vmatprep.subr.bf16.mxu0 0
        %872 = vmatpush2.bf16.msra.mxu0 0
        %873 = vmatprep.subr.bf16.mxu0 0
        %874 = vmatpush2.bf16.msra.mxu0 0
        %875 = vmatprep.subr.bf16.mxu0 0
        %876 = vmatpush2.bf16.msra.mxu0 0
        %877 = vmatprep.mubr.bf16.mxu0 0
        %878 = vmatmul.mubr.bf16.gmra.mxu0 %v840
        %v879 = vpop.f32.mrf.mxu0
        %v880 = vadd.f32 0.0, %v879
        %v881 = vpop.f32.mrf.mxu0
        %v882 = vpop.f32.mrf.mxu0
        %v883 = vpop.f32.mrf.mxu0
        %884 = vdwg.mxu0
        %885 = vrot.lane.b32.xlu0 %v547, 104
        %v886 = vpop.permute.xlu0 %885
        %887 = vrot.lane.b32.xlu0 %v547, 72
        %v888 = vpop.permute.xlu0 %887
        %v890 = vsel %vm557, %v886, 0
        %v893 = vsel %vm557, %v888, 0
        %895 = vmatprep.subr.bf16.mxu0 0
        %896 = vmatpush1.bf16.xpose.msra.mxu0 0
        %897 = vmatprep.subr.bf16.mxu0 0
        %898 = vmatpush1.bf16.xpose.msra.mxu0 0
        %899 = vmatprep.subr.bf16.mxu0 0
        %900 = vmatpush1.bf16.xpose.msra.mxu0 0
        %901 = vmatprep.subr.bf16.mxu0 0
        %902 = vmatpush1.bf16.xpose.msra.mxu0 0
        %903 = vmatprep.subr.bf16.mxu0 0
        %904 = vmatpush1.bf16.xpose.msra.mxu0 0
        %905 = vmatprep.subr.bf16.mxu0 0
        %906 = vmatpush1.bf16.xpose.msra.mxu0 0
        %907 = vmatprep.subr.bf16.mxu0 0
        %908 = vmatpush1.bf16.xpose.msra.mxu0 0
        %909 = vmatprep.subr.bf16.mxu0 0
        %910 = vmatpush1.bf16.xpose.msra.mxu0 %v893
        %911 = vmatprep.subr.bf16.mxu0 0
        %912 = vmatpush2.bf16.xpose.msra.mxu0 0
        %913 = vmatprep.subr.bf16.mxu0 0
        %914 = vmatpush2.bf16.xpose.msra.mxu0 0
        %915 = vmatprep.subr.bf16.mxu0 0
        %916 = vmatpush2.bf16.xpose.msra.mxu0 0
        %917 = vmatprep.subr.bf16.mxu0 0
        %918 = vmatpush2.bf16.xpose.msra.mxu0 0
        %919 = vmatprep.subr.bf16.mxu0 0
        %920 = vmatpush2.bf16.xpose.msra.mxu0 0
        %921 = vmatprep.subr.bf16.mxu0 0
        %922 = vmatpush2.bf16.xpose.msra.mxu0 0
        %923 = vmatprep.subr.bf16.mxu0 0
        %924 = vmatpush2.bf16.xpose.msra.mxu0 0
        %925 = vmatprep.subr.bf16.mxu0 0
        %926 = vmatpush2.bf16.xpose.msra.mxu0 0
        %927 = vmatprep.mubr.bf16.mxu0 0
        %928 = vmatmul.mubr.bf16.gmra.mxu0 %v890
        %v929 = vpop.f32.mrf.mxu0
        %v930 = vadd.f32 %v552, %v929
        %v931 = vpop.f32.mrf.mxu0
        %v932 = vpop.f32.mrf.mxu0
        %v933 = vpop.f32.mrf.mxu0
        %934 = vdwg.mxu0
        %v935 = vsel %vm557, %v930, -inf
        %936 = vmax.xlane.f32.xlu0 %v935
        %v937 = vpop.xlane.xlu0 %936
        %v938 = vsub.f32 %v930, %v937
        %v939 = vmul.f32 %v938, 1.442695
        %v940 = vpow.pop %v939
        %v941 = vsel %vm557, %v940, 0.0
        %942 = vadd.xlane.f32.xlu0 %v941
        %v943 = vpop.xlane.xlu0 %942
        %v944 = vrcp.pop %v943
        %v945 = vmul.f32 %v940, %v944
        %v946 = vpack.c.bf16 %v945, %v945
        %947 = vrot.lane.b32.xlu0 %v547, 40
        %v948 = vpop.permute.xlu0 %947
        %v950 = vsel %vm557, %v946, 0
        %v953 = vsel %vm621, %v948, 0
        %955 = vmatprep.subr.bf16.mxu0 0
        %956 = vmatpush1.bf16.msra.mxu0 0
        %957 = vmatprep.subr.bf16.mxu0 0
        %958 = vmatpush1.bf16.msra.mxu0 0
        %959 = vmatprep.subr.bf16.mxu0 0
        %960 = vmatpush1.bf16.msra.mxu0 0
        %961 = vmatprep.subr.bf16.mxu0 0
        %962 = vmatpush1.bf16.msra.mxu0 0
        %963 = vmatprep.subr.bf16.mxu0 0
        %964 = vmatpush1.bf16.msra.mxu0 0
        %965 = vmatprep.subr.bf16.mxu0 0
        %966 = vmatpush1.bf16.msra.mxu0 0
        %967 = vmatprep.subr.bf16.mxu0 0
        %968 = vmatpush1.bf16.msra.mxu0 0
        %969 = vmatprep.subr.bf16.mxu0 0
        %970 = vmatpush1.bf16.msra.mxu0 %v953
        %971 = vmatprep.subr.bf16.mxu0 0
        %972 = vmatpush2.bf16.msra.mxu0 0
        %973 = vmatprep.subr.bf16.mxu0 0
        %974 = vmatpush2.bf16.msra.mxu0 0
        %975 = vmatprep.subr.bf16.mxu0 0
        %976 = vmatpush2.bf16.msra.mxu0 0
        %977 = vmatprep.subr.bf16.mxu0 0
        %978 = vmatpush2.bf16.msra.mxu0 0
        %979 = vmatprep.subr.bf16.mxu0 0
        %980 = vmatpush2.bf16.msra.mxu0 0
        %981 = vmatprep.subr.bf16.mxu0 0
        %982 = vmatpush2.bf16.msra.mxu0 0
        %983 = vmatprep.subr.bf16.mxu0 0
        %984 = vmatpush2.bf16.msra.mxu0 0
        %985 = vmatprep.subr.bf16.mxu0 0
        %986 = vmatpush2.bf16.msra.mxu0 0
        %987 = vmatprep.mubr.bf16.mxu0 0
        %988 = vmatmul.mubr.bf16.gmra.mxu0 %v950
        %v989 = vpop.f32.mrf.mxu0
        %v990 = vadd.f32 0.0, %v989
        %v991 = vpop.f32.mrf.mxu0
        %v992 = vpop.f32.mrf.mxu0
        %v993 = vpop.f32.mrf.mxu0
        %994 = vdwg.mxu0
        %996 = vrot.lane.b32.xlu0 %v770, 8
        %v997 = vpop.permute.xlu0 %996
        %1000 = vrot.lane.b32.xlu0 %v880, 16
        %v1001 = vpop.permute.xlu0 %1000
        %1004 = vrot.lane.b32.xlu0 %v990, 24
        %v1005 = vpop.permute.xlu0 %1004
        %v1007 = vsel %vm557, %v660, %v997
        %vm1008 = vcmask 130048
        %v1009 = vsel %vm1008, %v1007, %v1001
        %vm1010 = vcmask 195584
        %v1011 = vsel %vm1010, %v1009, %v1005
        %v1012 = vpack.c.bf16 %v1011, %v1011
        %v1013 = vld [vmem:[%s5] sm:$0xf]
        %v1014 = vld [vmem:[%s5 + $0x4] sm:$0xf]
        %v1015 = vld [vmem:[%s5 + $0x8] sm:$0xf]
        %v1016 = vld [vmem:[%s5 + $0xc] sm:$0xf]
        %v1017 = vlaneseq
        %v1018 = vshrl.u32 %v1017, 7
        %v1019 = vsub.s32 0, %v1018
        %v1020 = vrot.slane %v451, %v1019
        %v1025 = vunpack.c.l.b16 %v1013
        %v1026 = vunpack.c.l.b16 %v1014
        %v1027 = vunpack.c.l.b16 %v1015
        %v1028 = vunpack.c.l.b16 %v1016
        %v1029 = vpack.c.b16 %v1026, %v1025
        %v1030 = vpack.c.b16 %v1028, %v1027
        %v1034 = vsel %vm455, %v1012, 0
        %1036 = vmatprep.subr.bf16.mxu0 0
        %1037 = vmatpush1.bf16.msra.mxu0 0
        %1038 = vmatprep.subr.bf16.mxu0 0
        %1039 = vmatpush1.bf16.msra.mxu0 0
        %1040 = vmatprep.subr.bf16.mxu0 0
        %1041 = vmatpush1.bf16.msra.mxu0 0
        %1042 = vmatprep.subr.bf16.mxu0 0
        %1043 = vmatpush1.bf16.msra.mxu0 0
        %1044 = vmatprep.subr.bf16.mxu0 0
        %1045 = vmatpush1.bf16.msra.mxu0 0
        %1046 = vmatprep.subr.bf16.mxu0 0
        %1047 = vmatpush1.bf16.msra.mxu0 0
        %1048 = vmatprep.subr.bf16.mxu0 0
        %1049 = vmatpush1.bf16.msra.mxu0 %v1030
        %1050 = vmatprep.subr.bf16.mxu0 0
        %1051 = vmatpush1.bf16.msra.mxu0 %v1029
        %1052 = vmatprep.subr.bf16.mxu0 0
        %1053 = vmatpush2.bf16.msra.mxu0 0
        %1054 = vmatprep.subr.bf16.mxu0 0
        %1055 = vmatpush2.bf16.msra.mxu0 0
        %1056 = vmatprep.subr.bf16.mxu0 0
        %1057 = vmatpush2.bf16.msra.mxu0 0
        %1058 = vmatprep.subr.bf16.mxu0 0
        %1059 = vmatpush2.bf16.msra.mxu0 0
        %1060 = vmatprep.subr.bf16.mxu0 0
        %1061 = vmatpush2.bf16.msra.mxu0 0
        %1062 = vmatprep.subr.bf16.mxu0 0
        %1063 = vmatpush2.bf16.msra.mxu0 0
        %1064 = vmatprep.subr.bf16.mxu0 0
        %1065 = vmatpush2.bf16.msra.mxu0 0
        %1066 = vmatprep.subr.bf16.mxu0 0
        %1067 = vmatpush2.bf16.msra.mxu0 0
        %1068 = vmatprep.mubr.bf16.mxu0 0
        %1069 = vmatmul.mubr.bf16.gmra.mxu0 %v1034
        %v1070 = vpop.f32.mrf.mxu0
        %v1071 = vadd.f32 %v1020, %v1070
        %v1072 = vpop.f32.mrf.mxu0
        %v1073 = vpop.f32.mrf.mxu0
        %v1074 = vpop.f32.mrf.mxu0
        %1075 = vdwg.mxu0
        %v1076 = vadd.f32 %v1071, %v479
        %v1077 = vsel %vm455, %v1076, 0.0
        %1078 = vadd.xlane.f32.xlu0 %v1077
        %v1079 = vpop.xlane.xlu0 %1078
        %v1080 = vmul.f32 %v1079, %v459
        %v1081 = vsub.f32 %v1076, %v1080
        %v1082 = vmul.f32 %v1081, %v1081
        %v1083 = vsel %vm455, %v1082, 0.0
        %1084 = vadd.xlane.f32.xlu0 %v1083
        %v1085 = vpop.xlane.xlu0 %1084
        %v1086 = vmul.f32 %v1085, %v459
        %v1087 = vadd.f32 %v1086, 1e-12
        %v1088 = vrsqrt.pop %v1087
        %v1089 = vmul.f32 %v1081, %v1088
        %v1090 = vlaneseq
        %v1091 = vshrl.u32 %v1090, 7
        %v1092 = vsub.s32 1, %v1091
        %v1093 = vrot.slane %v451, %v1092
        %v1094 = vmul.f32 %v1089, %v1093
        %v1095 = vlaneseq
        %v1096 = vshrl.u32 %v1095, 7
        %v1097 = vsub.s32 2, %v1096
        %v1098 = vrot.slane %v451, %v1097
        %v1099 = vadd.f32 %v1094, %v1098
        %v1100 = vpack.c.bf16 %v1099, %v1099
        %v1101 = vld [vmem:[%s7] sm:$0xf]
        %v1102 = vld [vmem:[%s7 + $0x4] sm:$0xf]
        %v1103 = vld [vmem:[%s7 + $0x8] sm:$0xf]
        %v1104 = vld [vmem:[%s7 + $0xc] sm:$0xf]
        %v1105 = vld [vmem:[%s8] sm:$0x1]
        %v1107 = vlaneseq
        %v1108 = vshrl.u32 %v1107, 7
        %v1109 = vsub.s32 0, %v1108
        %v1110 = vrot.slane %v1105, %v1109
        %v1116 = vunpack.c.l.b16 %v1101
        %v1117 = vunpack.c.l.b16 %v1102
        %v1118 = vunpack.c.l.b16 %v1103
        %v1119 = vunpack.c.l.b16 %v1104
        %v1120 = vpack.c.b16 %v1117, %v1116
        %v1121 = vpack.c.b16 %v1119, %v1118
        %v1125 = vsel %vm455, %v1100, 0
        %1127 = vmatprep.subr.bf16.mxu0 0
        %1128 = vmatpush1.bf16.msra.mxu0 0
        %1129 = vmatprep.subr.bf16.mxu0 0
        %1130 = vmatpush1.bf16.msra.mxu0 0
        %1131 = vmatprep.subr.bf16.mxu0 0
        %1132 = vmatpush1.bf16.msra.mxu0 0
        %1133 = vmatprep.subr.bf16.mxu0 0
        %1134 = vmatpush1.bf16.msra.mxu0 0
        %1135 = vmatprep.subr.bf16.mxu0 0
        %1136 = vmatpush1.bf16.msra.mxu0 0
        %1137 = vmatprep.subr.bf16.mxu0 0
        %1138 = vmatpush1.bf16.msra.mxu0 0
        %1139 = vmatprep.subr.bf16.mxu0 0
        %1140 = vmatpush1.bf16.msra.mxu0 %v1121
        %1141 = vmatprep.subr.bf16.mxu0 0
        %1142 = vmatpush1.bf16.msra.mxu0 %v1120
        %1143 = vmatprep.subr.bf16.mxu0 0
        %1144 = vmatpush2.bf16.msra.mxu0 0
        %1145 = vmatprep.subr.bf16.mxu0 0
        %1146 = vmatpush2.bf16.msra.mxu0 0
        %1147 = vmatprep.subr.bf16.mxu0 0
        %1148 = vmatpush2.bf16.msra.mxu0 0
        %1149 = vmatprep.subr.bf16.mxu0 0
        %1150 = vmatpush2.bf16.msra.mxu0 0
        %1151 = vmatprep.subr.bf16.mxu0 0
        %1152 = vmatpush2.bf16.msra.mxu0 0
        %1153 = vmatprep.subr.bf16.mxu0 0
        %1154 = vmatpush2.bf16.msra.mxu0 0
        %1155 = vmatprep.subr.bf16.mxu0 0
        %1156 = vmatpush2.bf16.msra.mxu0 0
        %1157 = vmatprep.subr.bf16.mxu0 0
        %1158 = vmatpush2.bf16.msra.mxu0 0
        %1159 = vmatprep.mubr.bf16.mxu0 0
        %1160 = vmatmul.mubr.bf16.gmra.mxu0 %v1125
        %v1161 = vpop.f32.mrf.mxu0
        %v1162 = vadd.f32 %v1110, %v1161
        %v1163 = vpop.f32.mrf.mxu0
        %v1164 = vpop.f32.mrf.mxu0
        %v1165 = vpop.f32.mrf.mxu0
        %1166 = vdwg.mxu0
        %v1167 = vmul.f32 %v1162, 0.5
        %v1168 = vmul.f32 %v1162, 0.044715
        %v1169 = vmul.f32 %v1168, %v1162
        %v1170 = vmul.f32 %v1169, %v1162
        %v1171 = vadd.f32 %v1162, %v1170
        %v1172 = vmul.f32 %v1171, 0.7978846
        %v1173 = vtanh.pop %v1172
        %v1174 = vadd.f32 %v1173, 1.0
        %v1175 = vmul.f32 %v1167, %v1174
        %v1176 = vpack.c.bf16 %v1175, %v1175
        %v1177 = vld [vmem:[%s9] sm:$0xf]
        %v1178 = vld [vmem:[%s9 + $0x4] sm:$0xf]
        %v1179 = vld [vmem:[%s9 + $0x8] sm:$0xf]
        %v1180 = vld [vmem:[%s9 + $0xc] sm:$0xf]
        %v1181 = vld [vmem:[%s9 + $0x10] sm:$0xf]
        %v1182 = vld [vmem:[%s9 + $0x14] sm:$0xf]
        %v1183 = vld [vmem:[%s9 + $0x18] sm:$0xf]
        %v1184 = vld [vmem:[%s9 + $0x1c] sm:$0xf]
        %v1185 = vlaneseq
        %v1186 = vshrl.u32 %v1185, 7
        %v1187 = vsub.s32 3, %v1186
        %v1188 = vrot.slane %v451, %v1187
        %v1197 = vunpack.c.l.b16 %v1177
        %v1198 = vunpack.c.l.b16 %v1178
        %v1199 = vunpack.c.l.b16 %v1179
        %v1200 = vunpack.c.l.b16 %v1180
        %v1201 = vunpack.c.l.b16 %v1181
        %v1202 = vunpack.c.l.b16 %v1182
        %v1203 = vunpack.c.l.b16 %v1183
        %v1204 = vunpack.c.l.b16 %v1184
        %v1205 = vpack.c.b16 %v1198, %v1197
        %v1206 = vpack.c.b16 %v1200, %v1199
        %v1207 = vpack.c.b16 %v1202, %v1201
        %v1208 = vpack.c.b16 %v1204, %v1203
        %vm1213 = vcmask 523264
        %v1215 = vsel %vm1213, %v1176, 0
        %1217 = vmatprep.subr.bf16.mxu0 0
        %1218 = vmatpush1.bf16.msra.mxu0 0
        %1219 = vmatprep.subr.bf16.mxu0 0
        %1220 = vmatpush1.bf16.msra.mxu0 0
        %1221 = vmatprep.subr.bf16.mxu0 0
        %1222 = vmatpush1.bf16.msra.mxu0 0
        %1223 = vmatprep.subr.bf16.mxu0 0
        %1224 = vmatpush1.bf16.msra.mxu0 0
        %1225 = vmatprep.subr.bf16.mxu0 0
        %1226 = vmatpush1.bf16.msra.mxu0 %v1208
        %1227 = vmatprep.subr.bf16.mxu0 0
        %1228 = vmatpush1.bf16.msra.mxu0 %v1207
        %1229 = vmatprep.subr.bf16.mxu0 0
        %1230 = vmatpush1.bf16.msra.mxu0 %v1206
        %1231 = vmatprep.subr.bf16.mxu0 0
        %1232 = vmatpush1.bf16.msra.mxu0 %v1205
        %1233 = vmatprep.subr.bf16.mxu0 0
        %1234 = vmatpush2.bf16.msra.mxu0 0
        %1235 = vmatprep.subr.bf16.mxu0 0
        %1236 = vmatpush2.bf16.msra.mxu0 0
        %1237 = vmatprep.subr.bf16.mxu0 0
        %1238 = vmatpush2.bf16.msra.mxu0 0
        %1239 = vmatprep.subr.bf16.mxu0 0
        %1240 = vmatpush2.bf16.msra.mxu0 0
        %1241 = vmatprep.subr.bf16.mxu0 0
        %1242 = vmatpush2.bf16.msra.mxu0 0
        %1243 = vmatprep.subr.bf16.mxu0 0
        %1244 = vmatpush2.bf16.msra.mxu0 0
        %1245 = vmatprep.subr.bf16.mxu0 0
        %1246 = vmatpush2.bf16.msra.mxu0 0
        %1247 = vmatprep.subr.bf16.mxu0 0
        %1248 = vmatpush2.bf16.msra.mxu0 0
        %1249 = vmatprep.mubr.bf16.mxu0 0
        %1250 = vmatmul.mubr.bf16.gmra.mxu0 %v1215
        %v1251 = vpop.f32.mrf.mxu0
        %v1252 = vadd.f32 %v1188, %v1251
        %v1253 = vpop.f32.mrf.mxu0
        %v1254 = vpop.f32.mrf.mxu0
        %v1255 = vpop.f32.mrf.mxu0
        %1256 = vdwg.mxu0
        %v1257 = vadd.f32 %v1252, %v1099
        %v1258 = vsel %vm455, %v1257, 0.0
        %1259 = vadd.xlane.f32.xlu0 %v1258
        %v1260 = vpop.xlane.xlu0 %1259
        %v1261 = vmul.f32 %v1260, %v459
        %v1262 = vsub.f32 %v1257, %v1261
        %v1263 = vmul.f32 %v1262, %v1262
        %v1264 = vsel %vm455, %v1263, 0.0
        %1265 = vadd.xlane.f32.xlu0 %v1264
        %v1266 = vpop.xlane.xlu0 %1265
        %v1267 = vmul.f32 %v1266, %v459
        %v1268 = vadd.f32 %v1267, 1e-12
        %v1269 = vrsqrt.pop %v1268
        %v1270 = vmul.f32 %v1262, %v1269
        %v1271 = vlaneseq
        %v1272 = vshrl.u32 %v1271, 7
        %v1273 = vsub.s32 4, %v1272
        %v1274 = vrot.slane %v451, %v1273
        %v1275 = vmul.f32 %v1270, %v1274
        %v1276 = vlaneseq
        %v1277 = vshrl.u32 %v1276, 7
        %v1278 = vsub.s32 5, %v1277
        %v1279 = vrot.slane %v451, %v1278
        %v1280 = vadd.f32 %v1275, %v1279
        %v1281 = vpack.c.bf16 %v1280, %v1280
        %s1282 = scalar_lea.vmem %s3, 16
        %v1283 = vld [vmem:[%s1282] sm:$0xf]
        %v1284 = vld [vmem:[%s1282 + $0x4] sm:$0xf]
        %v1285 = vld [vmem:[%s1282 + $0x8] sm:$0xf]
        %v1286 = vld [vmem:[%s1282 + $0xc] sm:$0xf]
        %s1287 = scalar_lea.vmem %s4, 1
        %v1288 = vld [vmem:[%s1287] sm:$0x1]
        %v1290 = vlaneseq
        %v1291 = vshrl.u32 %v1290, 7
        %v1292 = vsub.s32 0, %v1291
        %v1293 = vrot.slane %v1288, %v1292
        %v1299 = vunpack.c.l.b16 %v1283
        %v1300 = vunpack.c.l.b16 %v1284
        %v1301 = vunpack.c.l.b16 %v1285
        %v1302 = vunpack.c.l.b16 %v1286
        %v1303 = vpack.c.b16 %v1300, %v1299
        %v1304 = vpack.c.b16 %v1302, %v1301
        %v1308 = vsel %vm455, %v1281, 0
        %1310 = vmatprep.subr.bf16.mxu0 0
        %1311 = vmatpush1.bf16.msra.mxu0 0
        %1312 = vmatprep.subr.bf16.mxu0 0
        %1313 = vmatpush1.bf16.msra.mxu0 0
        %1314 = vmatprep.subr.bf16.mxu0 0
        %1315 = vmatpush1.bf16.msra.mxu0 0
        %1316 = vmatprep.subr.bf16.mxu0 0
        %1317 = vmatpush1.bf16.msra.mxu0 0
        %1318 = vmatprep.subr.bf16.mxu0 0
        %1319 = vmatpush1.bf16.msra.mxu0 0
        %1320 = vmatprep.subr.bf16.mxu0 0
        %1321 = vmatpush1.bf16.msra.mxu0 0
        %1322 = vmatprep.subr.bf16.mxu0 0
        %1323 = vmatpush1.bf16.msra.mxu0 %v1304
        %1324 = vmatprep.subr.bf16.mxu0 0
        %1325 = vmatpush1.bf16.msra.mxu0 %v1303
        %1326 = vmatprep.subr.bf16.mxu0 0
        %1327 = vmatpush2.bf16.msra.mxu0 0
        %1328 = vmatprep.subr.bf16.mxu0 0
        %1329 = vmatpush2.bf16.msra.mxu0 0
        %1330 = vmatprep.subr.bf16.mxu0 0
        %1331 = vmatpush2.bf16.msra.mxu0 0
        %1332 = vmatprep.subr.bf16.mxu0 0
        %1333 = vmatpush2.bf16.msra.mxu0 0
        %1334 = vmatprep.subr.bf16.mxu0 0
        %1335 = vmatpush2.bf16.msra.mxu0 0
        %1336 = vmatprep.subr.bf16.mxu0 0
        %1337 = vmatpush2.bf16.msra.mxu0 0
        %1338 = vmatprep.subr.bf16.mxu0 0
        %1339 = vmatpush2.bf16.msra.mxu0 0
        %1340 = vmatprep.subr.bf16.mxu0 0
        %1341 = vmatpush2.bf16.msra.mxu0 0
        %1342 = vmatprep.mubr.bf16.mxu0 0
        %1343 = vmatmul.mubr.bf16.gmra.mxu0 %v1308
        %v1344 = vpop.f32.mrf.mxu0
        %v1345 = vadd.f32 %v1293, %v1344
        %v1346 = vpop.f32.mrf.mxu0
        %v1347 = vpop.f32.mrf.mxu0
        %v1348 = vpop.f32.mrf.mxu0
        %1349 = vdwg.mxu0
        %v1350 = vpack.c.bf16 %v1345, %v1345
        %1352 = vrot.lane.b32.xlu0 %v1350, 96
        %v1353 = vpop.permute.xlu0 %1352
        %v1355 = vsel %vm557, %v1350, 0
        %v1358 = vsel %vm557, %v1353, 0
        %1360 = vmatprep.subr.bf16.mxu0 0
        %1361 = vmatpush1.bf16.xpose.msra.mxu0 0
        %1362 = vmatprep.subr.bf16.mxu0 0
        %1363 = vmatpush1.bf16.xpose.msra.mxu0 0
        %1364 = vmatprep.subr.bf16.mxu0 0
        %1365 = vmatpush1.bf16.xpose.msra.mxu0 0
        %1366 = vmatprep.subr.bf16.mxu0 0
        %1367 = vmatpush1.bf16.xpose.msra.mxu0 0
        %1368 = vmatprep.subr.bf16.mxu0 0
        %1369 = vmatpush1.bf16.xpose.msra.mxu0 0
        %1370 = vmatprep.subr.bf16.mxu0 0
        %1371 = vmatpush1.bf16.xpose.msra.mxu0 0
        %1372 = vmatprep.subr.bf16.mxu0 0
        %1373 = vmatpush1.bf16.xpose.msra.mxu0 0
        %1374 = vmatprep.subr.bf16.mxu0 0
        %1375 = vmatpush1.bf16.xpose.msra.mxu0 %v1358
        %1376 = vmatprep.subr.bf16.mxu0 0
        %1377 = vmatpush2.bf16.xpose.msra.mxu0 0
        %1378 = vmatprep.subr.bf16.mxu0 0
        %1379 = vmatpush2.bf16.xpose.msra.mxu0 0
        %1380 = vmatprep.subr.bf16.mxu0 0
        %1381 = vmatpush2.bf16.xpose.msra.mxu0 0
        %1382 = vmatprep.subr.bf16.mxu0 0
        %1383 = vmatpush2.bf16.xpose.msra.mxu0 0
        %1384 = vmatprep.subr.bf16.mxu0 0
        %1385 = vmatpush2.bf16.xpose.msra.mxu0 0
        %1386 = vmatprep.subr.bf16.mxu0 0
        %1387 = vmatpush2.bf16.xpose.msra.mxu0 0
        %1388 = vmatprep.subr.bf16.mxu0 0
        %1389 = vmatpush2.bf16.xpose.msra.mxu0 0
        %1390 = vmatprep.subr.bf16.mxu0 0
        %1391 = vmatpush2.bf16.xpose.msra.mxu0 0
        %1392 = vmatprep.mubr.bf16.mxu0 0
        %1393 = vmatmul.mubr.bf16.gmra.mxu0 %v1355
        %v1394 = vpop.f32.mrf.mxu0
        %v1395 = vadd.f32 %v552, %v1394
        %v1396 = vpop.f32.mrf.mxu0
        %v1397 = vpop.f32.mrf.mxu0
        %v1398 = vpop.f32.mrf.mxu0
        %1399 = vdwg.mxu0
        %v1400 = vsel %vm557, %v1395, -inf
        %1401 = vmax.xlane.f32.xlu0 %v1400
        %v1402 = vpop.xlane.xlu0 %1401
        %v1403 = vsub.f32 %v1395, %v1402
        %v1404 = vmul.f32 %v1403, 1.442695
        %v1405 = vpow.pop %v1404
        %v1406 = vsel %vm557, %v1405, 0.0
        %1407 = vadd.xlane.f32.xlu0 %v1406
        %v1408 = vpop.xlane.xlu0 %1407
        %v1409 = vrcp.pop %v1408
        %v1410 = vmul.f32 %v1405, %v1409
        %v1411 = vpack.c.bf16 %v1410, %v1410
        %1412 = vrot.lane.b32.xlu0 %v1350, 64
        %v1413 = vpop.permute.xlu0 %1412
        %v1415 = vsel %vm557, %v1411, 0
        %v1418 = vsel %vm621, %v1413, 0
        %1420 = vmatprep.subr.bf16.mxu0 0
        %1421 = vmatpush1.bf16.msra.mxu0 0
        %1422 = vmatprep.subr.bf16.mxu0 0
        %1423 = vmatpush1.bf16.msra.mxu0 0
        %1424 = vmatprep.subr.bf16.mxu0 0
        %1425 = vmatpush1.bf16.msra.mxu0 0
        %1426 = vmatprep.subr.bf16.mxu0 0
        %1427 = vmatpush1.bf16.msra.mxu0 0
        %1428 = vmatprep.subr.bf16.mxu0 0
        %1429 = vmatpush1.bf16.msra.mxu0 0
        %1430 = vmatprep.subr.bf16.mxu0 0
        %1431 = vmatpush1.bf16.msra.mxu0 0
        %1432 = vmatprep.subr.bf16.mxu0 0
        %1433 = vmatpush1.bf16.msra.mxu0 0
        %1434 = vmatprep.subr.bf16.mxu0 0
        %1435 = vmatpush1.bf16.msra.mxu0 %v1418
        %1436 = vmatprep.subr.bf16.mxu0 0
        %1437 = vmatpush2.bf16.msra.mxu0 0
        %1438 = vmatprep.subr.bf16.mxu0 0
        %1439 = vmatpush2.bf16.msra.mxu0 0
        %1440 = vmatprep.subr.bf16.mxu0 0
        %1441 = vmatpush2.bf16.msra.mxu0 0
        %1442 = vmatprep.subr.bf16.mxu0 0
        %1443 = vmatpush2.bf16.msra.mxu0 0
        %1444 = vmatprep.subr.bf16.mxu0 0
        %1445 = vmatpush2.bf16.msra.mxu0 0
        %1446 = vmatprep.subr.bf16.mxu0 0
        %1447 = vmatpush2.bf16.msra.mxu0 0
        %1448 = vmatprep.subr.bf16.mxu0 0
        %1449 = vmatpush2.bf16.msra.mxu0 0
        %1450 = vmatprep.subr.bf16.mxu0 0
        %1451 = vmatpush2.bf16.msra.mxu0 0
        %1452 = vmatprep.mubr.bf16.mxu0 0
        %1453 = vmatmul.mubr.bf16.gmra.mxu0 %v1415
        %v1454 = vpop.f32.mrf.mxu0
        %v1455 = vadd.f32 0.0, %v1454
        %v1456 = vpop.f32.mrf.mxu0
        %v1457 = vpop.f32.mrf.mxu0
        %v1458 = vpop.f32.mrf.mxu0
        %1459 = vdwg.mxu0
        %1460 = vrot.lane.b32.xlu0 %v1350, 120
        %v1461 = vpop.permute.xlu0 %1460
        %1462 = vrot.lane.b32.xlu0 %v1350, 88
        %v1463 = vpop.permute.xlu0 %1462
        %v1465 = vsel %vm557, %v1461, 0
        %v1468 = vsel %vm557, %v1463, 0
        %1470 = vmatprep.subr.bf16.mxu0 0
        %1471 = vmatpush1.bf16.xpose.msra.mxu0 0
        %1472 = vmatprep.subr.bf16.mxu0 0
        %1473 = vmatpush1.bf16.xpose.msra.mxu0 0
        %1474 = vmatprep.subr.bf16.mxu0 0
        %1475 = vmatpush1.bf16.xpose.msra.mxu0 0
        %1476 = vmatprep.subr.bf16.mxu0 0
        %1477 = vmatpush1.bf16.xpose.msra.mxu0 0
        %1478 = vmatprep.subr.bf16.mxu0 0
        %1479 = vmatpush1.bf16.xpose.msra.mxu0 0
        %1480 = vmatprep.subr.bf16.mxu0 0
        %1481 = vmatpush1.bf16.xpose.msra.mxu0 0
        %1482 = vmatprep.subr.bf16.mxu0 0
        %1483 = vmatpush1.bf16.xpose.msra.mxu0 0
        %1484 = vmatprep.subr.bf16.mxu0 0
        %1485 = vmatpush1.bf16.xpose.msra.mxu0 %v1468
        %1486 = vmatprep.subr.bf16.mxu0 0
        %1487 = vmatpush2.bf16.xpose.msra.mxu0 0
        %1488 = vmatprep.subr.bf16.mxu0 0
        %1489 = vmatpush2.bf16.xpose.msra.mxu0 0
        %1490 = vmatprep.subr.bf16.mxu0 0
        %1491 = vmatpush2.bf16.xpose.msra.mxu0 0
        %1492 = vmatprep.subr.bf16.mxu0 0
        %1493 = vmatpush2.bf16.xpose.msra.mxu0 0
        %1494 = vmatprep.subr.bf16.mxu0 0
        %1495 = vmatpush2.bf16.xpose.msra.mxu0 0
        %1496 = vmatprep.subr.bf16.mxu0 0
        %1497 = vmatpush2.bf16.xpose.msra.mxu0 0
        %1498 = vmatprep.subr.bf16.mxu0 0
        %1499 = vmatpush2.bf16.xpose.msra.mxu0 0
        %1500 = vmatprep.subr.bf16.mxu0 0
        %1501 = vmatpush2.bf16.xpose.msra.mxu0 0
        %1502 = vmatprep.mubr.bf16.mxu0 0
        %1503 = vmatmul.mubr.bf16.gmra.mxu0 %v1465
        %v1504 = vpop.f32.mrf.mxu0
        %v1505 = vadd.f32 %v552, %v1504
        %v1506 = vpop.f32.mrf.mxu0
        %v1507 = vpop.f32.mrf.mxu0
        %v1508 = vpop.f32.mrf.mxu0
        %1509 = vdwg.mxu0
        %v1510 = vsel %vm557, %v1505, -inf
        %1511 = vmax.xlane.f32.xlu0 %v1510
        %v1512 = vpop.xlane.xlu0 %1511
        %v1513 = vsub.f32 %v1505, %v1512
        %v1514 = vmul.f32 %v1513, 1.442695
        %v1515 = vpow.pop %v1514
        %v1516 = vsel %vm557, %v1515, 0.0
        %1517 = vadd.xlane.f32.xlu0 %v1516
        %v1518 = vpop.xlane.xlu0 %1517
        %v1519 = vrcp.pop %v1518
        %v1520 = vmul.f32 %v1515, %v1519
        %v1521 = vpack.c.bf16 %v1520, %v1520
        %1522 = vrot.lane.b32.xlu0 %v1350, 56
        %v1523 = vpop.permute.xlu0 %1522
        %v1525 = vsel %vm557, %v1521, 0
        %v1528 = vsel %vm621, %v1523, 0
        %1530 = vmatprep.subr.bf16.mxu0 0
        %1531 = vmatpush1.bf16.msra.mxu0 0
        %1532 = vmatprep.subr.bf16.mxu0 0
        %1533 = vmatpush1.bf16.msra.mxu0 0
        %1534 = vmatprep.subr.bf16.mxu0 0
        %1535 = vmatpush1.bf16.msra.mxu0 0
        %1536 = vmatprep.subr.bf16.mxu0 0
        %1537 = vmatpush1.bf16.msra.mxu0 0
        %1538 = vmatprep.subr.bf16.mxu0 0
        %1539 = vmatpush1.bf16.msra.mxu0 0
        %1540 = vmatprep.subr.bf16.mxu0 0
        %1541 = vmatpush1.bf16.msra.mxu0 0
        %1542 = vmatprep.subr.bf16.mxu0 0
        %1543 = vmatpush1.bf16.msra.mxu0 0
        %1544 = vmatprep.subr.bf16.mxu0 0
        %1545 = vmatpush1.bf16.msra.mxu0 %v1528
        %1546 = vmatprep.subr.bf16.mxu0 0
        %1547 = vmatpush2.bf16.msra.mxu0 0
        %1548 = vmatprep.subr.bf16.mxu0 0
        %1549 = vmatpush2.bf16.msra.mxu0 0
        %1550 = vmatprep.subr.bf16.mxu0 0
        %1551 = vmatpush2.bf16.msra.mxu0 0
        %1552 = vmatprep.subr.bf16.mxu0 0
        %1553 = vmatpush2.bf16.msra.mxu0 0
        %1554 = vmatprep.subr.bf16.mxu0 0
        %1555 = vmatpush2.bf16.msra.mxu0 0
        %1556 = vmatprep.subr.bf16.mxu0 0
        %1557 = vmatpush2.bf16.msra.mxu0 0
        %1558 = vmatprep.subr.bf16.mxu0 0
        %1559 = vmatpush2.bf16.msra.mxu0 0
        %1560 = vmatprep.subr.bf16.mxu0 0
        %1561 = vmatpush2.bf16.msra.mxu0 0
        %1562 = vmatprep.mubr.bf16.mxu0 0
        %1563 = vmatmul.mubr.bf16.gmra.mxu0 %v1525
        %v1564 = vpop.f32.mrf.mxu0
        %v1565 = vadd.f32 0.0, %v1564
        %v1566 = vpop.f32.mrf.mxu0
        %v1567 = vpop.f32.mrf.mxu0
        %v1568 = vpop.f32.mrf.mxu0
        %1569 = vdwg.mxu0
        %1570 = vrot.lane.b32.xlu0 %v1350, 112
        %v1571 = vpop.permute.xlu0 %1570
        %1572 = vrot.lane.b32.xlu0 %v1350, 80
        %v1573 = vpop.permute.xlu0 %1572
        %v1575 = vsel %vm557, %v1571, 0
        %v1578 = vsel %vm557, %v1573, 0
        %1580 = vmatprep.subr.bf16.mxu0 0
        %1581 = vmatpush1.bf16.xpose.msra.mxu0 0
        %1582 = vmatprep.subr.bf16.mxu0 0
        %1583 = vmatpush1.bf16.xpose.msra.mxu0 0
        %1584 = vmatprep.subr.bf16.mxu0 0
        %1585 = vmatpush1.bf16.xpose.msra.mxu0 0
        %1586 = vmatprep.subr.bf16.mxu0 0
        %1587 = vmatpush1.bf16.xpose.msra.mxu0 0
        %1588 = vmatprep.subr.bf16.mxu0 0
        %1589 = vmatpush1.bf16.xpose.msra.mxu0 0
        %1590 = vmatprep.subr.bf16.mxu0 0
        %1591 = vmatpush1.bf16.xpose.msra.mxu0 0
        %1592 = vmatprep.subr.bf16.mxu0 0
        %1593 = vmatpush1.bf16.xpose.msra.mxu0 0
        %1594 = vmatprep.subr.bf16.mxu0 0
        %1595 = vmatpush1.bf16.xpose.msra.mxu0 %v1578
        %1596 = vmatprep.subr.bf16.mxu0 0
        %1597 = vmatpush2.bf16.xpose.msra.mxu0 0
        %1598 = vmatprep.subr.bf16.mxu0 0
        %1599 = vmatpush2.bf16.xpose.msra.mxu0 0
        %1600 = vmatprep.subr.bf16.mxu0 0
        %1601 = vmatpush2.bf16.xpose.msra.mxu0 0
        %1602 = vmatprep.subr.bf16.mxu0 0
        %1603 = vmatpush2.bf16.xpose.msra.mxu0 0
        %1604 = vmatprep.subr.bf16.mxu0 0
        %1605 = vmatpush2.bf16.xpose.msra.mxu0 0
        %1606 = vmatprep.subr.bf16.mxu0 0
        %1607 = vmatpush2.bf16.xpose.msra.mxu0 0
        %1608 = vmatprep.subr.bf16.mxu0 0
        %1609 = vmatpush2.bf16.xpose.msra.mxu0 0
        %1610 = vmatprep.subr.bf16.mxu0 0
        %1611 = vmatpush2.bf16.xpose.msra.mxu0 0
        %1612 = vmatprep.mubr.bf16.mxu0 0
        %1613 = vmatmul.mubr.bf16.gmra.mxu0 %v1575
        %v1614 = vpop.f32.mrf.mxu0
        %v1615 = vadd.f32 %v552, %v1614
        %v1616 = vpop.f32.mrf.mxu0
        %v1617 = vpop.f32.mrf.mxu0
        %v1618 = vpop.f32.mrf.mxu0
        %1619 = vdwg.mxu0
        %v1620 = vsel %vm557, %v1615, -inf
        %1621 = vmax.xlane.f32.xlu0 %v1620
        %v1622 = vpop.xlane.xlu0 %1621
        %v1623 = vsub.f32 %v1615, %v1622
        %v1624 = vmul.f32 %v1623, 1.442695
        %v1625 = vpow.pop %v1624
        %v1626 = vsel %vm557, %v1625, 0.0
        %1627 = vadd.xlane.f32.xlu0 %v1626
        %v1628 = vpop.xlane.xlu0 %1627
        %v1629 = vrcp.pop %v1628
        %v1630 = vmul.f32 %v1625, %v1629
        %v1631 = vpack.c.bf16 %v1630, %v1630
        %1632 = vrot.lane.b32.xlu0 %v1350, 48
        %v1633 = vpop.permute.xlu0 %1632
        %v1635 = vsel %vm557, %v1631, 0
        %v1638 = vsel %vm621, %v1633, 0
        %1640 = vmatprep.subr.bf16.mxu0 0
        %1641 = vmatpush1.bf16.msra.mxu0 0
        %1642 = vmatprep.subr.bf16.mxu0 0
        %1643 = vmatpush1.bf16.msra.mxu0 0
        %1644 = vmatprep.subr.bf16.mxu0 0
        %1645 = vmatpush1.bf16.msra.mxu0 0
        %1646 = vmatprep.subr.bf16.mxu0 0
        %1647 = vmatpush1.bf16.msra.mxu0 0
        %1648 = vmatprep.subr.bf16.mxu0 0
        %1649 = vmatpush1.bf16.msra.mxu0 0
        %1650 = vmatprep.subr.bf16.mxu0 0
        %1651 = vmatpush1.bf16.msra.mxu0 0
        %1652 = vmatprep.subr.bf16.mxu0 0
        %1653 = vmatpush1.bf16.msra.mxu0 0
        %1654 = vmatprep.subr.bf16.mxu0 0
        %1655 = vmatpush1.bf16.msra.mxu0 %v1638
        %1656 = vmatprep.subr.bf16.mxu0 0
        %1657 = vmatpush2.bf16.msra.mxu0 0
        %1658 = vmatprep.subr.bf16.mxu0 0
        %1659 = vmatpush2.bf16.msra.mxu0 0
        %1660 = vmatprep.subr.bf16.mxu0 0
        %1661 = vmatpush2.bf16.msra.mxu0 0
        %1662 = vmatprep.subr.bf16.mxu0 0
        %1663 = vmatpush2.bf16.msra.mxu0 0
        %1664 = vmatprep.subr.bf16.mxu0 0
        %1665 = vmatpush2.bf16.msra.mxu0 0
        %1666 = vmatprep.subr.bf16.mxu0 0
        %1667 = vmatpush2.bf16.msra.mxu0 0
        %1668 = vmatprep.subr.bf16.mxu0 0
        %1669 = vmatpush2.bf16.msra.mxu0 0
        %1670 = vmatprep.subr.bf16.mxu0 0
        %1671 = vmatpush2.bf16.msra.mxu0 0
        %1672 = vmatprep.mubr.bf16.mxu0 0
        %1673 = vmatmul.mubr.bf16.gmra.mxu0 %v1635
        %v1674 = vpop.f32.mrf.mxu0
        %v1675 = vadd.f32 0.0, %v1674
        %v1676 = vpop.f32.mrf.mxu0
        %v1677 = vpop.f32.mrf.mxu0
        %v1678 = vpop.f32.mrf.mxu0
        %1679 = vdwg.mxu0
        %1680 = vrot.lane.b32.xlu0 %v1350, 104
        %v1681 = vpop.permute.xlu0 %1680
        %1682 = vrot.lane.b32.xlu0 %v1350, 72
        %v1683 = vpop.permute.xlu0 %1682
        %v1685 = vsel %vm557, %v1681, 0
        %v1688 = vsel %vm557, %v1683, 0
        %1690 = vmatprep.subr.bf16.mxu0 0
        %1691 = vmatpush1.bf16.xpose.msra.mxu0 0
        %1692 = vmatprep.subr.bf16.mxu0 0
        %1693 = vmatpush1.bf16.xpose.msra.mxu0 0
        %1694 = vmatprep.subr.bf16.mxu0 0
        %1695 = vmatpush1.bf16.xpose.msra.mxu0 0
        %1696 = vmatprep.subr.bf16.mxu0 0
        %1697 = vmatpush1.bf16.xpose.msra.mxu0 0
        %1698 = vmatprep.subr.bf16.mxu0 0
        %1699 = vmatpush1.bf16.xpose.msra.mxu0 0
        %1700 = vmatprep.subr.bf16.mxu0 0
        %1701 = vmatpush1.bf16.xpose.msra.mxu0 0
        %1702 = vmatprep.subr.bf16.mxu0 0
        %1703 = vmatpush1.bf16.xpose.msra.mxu0 0
        %1704 = vmatprep.subr.bf16.mxu0 0
        %1705 = vmatpush1.bf16.xpose.msra.mxu0 %v1688
        %1706 = vmatprep.subr.bf16.mxu0 0
        %1707 = vmatpush2.bf16.xpose.msra.mxu0 0
        %1708 = vmatprep.subr.bf16.mxu0 0
        %1709 = vmatpush2.bf16.xpose.msra.mxu0 0
        %1710 = vmatprep.subr.bf16.mxu0 0
        %1711 = vmatpush2.bf16.xpose.msra.mxu0 0
        %1712 = vmatprep.subr.bf16.mxu0 0
        %1713 = vmatpush2.bf16.xpose.msra.mxu0 0
        %1714 = vmatprep.subr.bf16.mxu0 0
        %1715 = vmatpush2.bf16.xpose.msra.mxu0 0
        %1716 = vmatprep.subr.bf16.mxu0 0
        %1717 = vmatpush2.bf16.xpose.msra.mxu0 0
        %1718 = vmatprep.subr.bf16.mxu0 0
        %1719 = vmatpush2.bf16.xpose.msra.mxu0 0
        %1720 = vmatprep.subr.bf16.mxu0 0
        %1721 = vmatpush2.bf16.xpose.msra.mxu0 0
        %1722 = vmatprep.mubr.bf16.mxu0 0
        %1723 = vmatmul.mubr.bf16.gmra.mxu0 %v1685
        %v1724 = vpop.f32.mrf.mxu0
        %v1725 = vadd.f32 %v552, %v1724
        %v1726 = vpop.f32.mrf.mxu0
        %v1727 = vpop.f32.mrf.mxu0
        %v1728 = vpop.f32.mrf.mxu0
        %1729 = vdwg.mxu0
        %v1730 = vsel %vm557, %v1725, -inf
        %1731 = vmax.xlane.f32.xlu0 %v1730
        %v1732 = vpop.xlane.xlu0 %1731
        %v1733 = vsub.f32 %v1725, %v1732
        %v1734 = vmul.f32 %v1733, 1.442695
        %v1735 = vpow.pop %v1734
        %v1736 = vsel %vm557, %v1735, 0.0
        %1737 = vadd.xlane.f32.xlu0 %v1736
        %v1738 = vpop.xlane.xlu0 %1737
        %v1739 = vrcp.pop %v1738
        %v1740 = vmul.f32 %v1735, %v1739
        %v1741 = vpack.c.bf16 %v1740, %v1740
        %1742 = vrot.lane.b32.xlu0 %v1350, 40
        %v1743 = vpop.permute.xlu0 %1742
        %v1745 = vsel %vm557, %v1741, 0
        %v1748 = vsel %vm621, %v1743, 0
        %1750 = vmatprep.subr.bf16.mxu0 0
        %1751 = vmatpush1.bf16.msra.mxu0 0
        %1752 = vmatprep.subr.bf16.mxu0 0
        %1753 = vmatpush1.bf16.msra.mxu0 0
        %1754 = vmatprep.subr.bf16.mxu0 0
        %1755 = vmatpush1.bf16.msra.mxu0 0
        %1756 = vmatprep.subr.bf16.mxu0 0
        %1757 = vmatpush1.bf16.msra.mxu0 0
        %1758 = vmatprep.subr.bf16.mxu0 0
        %1759 = vmatpush1.bf16.msra.mxu0 0
        %1760 = vmatprep.subr.bf16.mxu0 0
        %1761 = vmatpush1.bf16.msra.mxu0 0
        %1762 = vmatprep.subr.bf16.mxu0 0
        %1763 = vmatpush1.bf16.msra.mxu0 0
        %1764 = vmatprep.subr.bf16.mxu0 0
        %1765 = vmatpush1.bf16.msra.mxu0 %v1748
        %1766 = vmatprep.subr.bf16.mxu0 0
        %1767 = vmatpush2.bf16.msra.mxu0 0
        %1768 = vmatprep.subr.bf16.mxu0 0
        %1769 = vmatpush2.bf16.msra.mxu0 0
        %1770 = vmatprep.subr.bf16.mxu0 0
        %1771 = vmatpush2.bf16.msra.mxu0 0
        %1772 = vmatprep.subr.bf16.mxu0 0
        %1773 = vmatpush2.bf16.msra.mxu0 0
        %1774 = vmatprep.subr.bf16.mxu0 0
        %1775 = vmatpush2.bf16.msra.mxu0 0
        %1776 = vmatprep.subr.bf16.mxu0 0
        %1777 = vmatpush2.bf16.msra.mxu0 0
        %1778 = vmatprep.subr.bf16.mxu0 0
        %1779 = vmatpush2.bf16.msra.mxu0 0
        %1780 = vmatprep.subr.bf16.mxu0 0
        %1781 = vmatpush2.bf16.msra.mxu0 0
        %1782 = vmatprep.mubr.bf16.mxu0 0
        %1783 = vmatmul.mubr.bf16.gmra.mxu0 %v1745
        %v1784 = vpop.f32.mrf.mxu0
        %v1785 = vadd.f32 0.0, %v1784
        %v1786 = vpop.f32.mrf.mxu0
        %v1787 = vpop.f32.mrf.mxu0
        %v1788 = vpop.f32.mrf.mxu0
        %1789 = vdwg.mxu0
        %1791 = vrot.lane.b32.xlu0 %v1565, 8
        %v1792 = vpop.permute.xlu0 %1791
        %1795 = vrot.lane.b32.xlu0 %v1675, 16
        %v1796 = vpop.permute.xlu0 %1795
        %1799 = vrot.lane.b32.xlu0 %v1785, 24
        %v1800 = vpop.permute.xlu0 %1799
        %v1802 = vsel %vm557, %v1455, %v1792
        %v1803 = vsel %vm1008, %v1802, %v1796
        %v1804 = vsel %vm1010, %v1803, %v1800
        %v1805 = vpack.c.bf16 %v1804, %v1804
        %s1806 = scalar_lea.vmem %s5, 16
        %v1807 = vld [vmem:[%s1806] sm:$0xf]
        %v1808 = vld [vmem:[%s1806 + $0x4] sm:$0xf]
        %v1809 = vld [vmem:[%s1806 + $0x8] sm:$0xf]
        %v1810 = vld [vmem:[%s1806 + $0xc] sm:$0xf]
        %v1811 = vlaneseq
        %v1812 = vshrl.u32 %v1811, 7
        %v1813 = vsub.s32 0, %v1812
        %v1814 = vrot.slane %v452, %v1813
        %v1819 = vunpack.c.l.b16 %v1807
        %v1820 = vunpack.c.l.b16 %v1808
        %v1821 = vunpack.c.l.b16 %v1809
        %v1822 = vunpack.c.l.b16 %v1810
        %v1823 = vpack.c.b16 %v1820, %v1819
        %v1824 = vpack.c.b16 %v1822, %v1821
        %v1828 = vsel %vm455, %v1805, 0
        %1830 = vmatprep.subr.bf16.mxu0 0
        %1831 = vmatpush1.bf16.msra.mxu0 0
        %1832 = vmatprep.subr.bf16.mxu0 0
        %1833 = vmatpush1.bf16.msra.mxu0 0
        %1834 = vmatprep.subr.bf16.mxu0 0
        %1835 = vmatpush1.bf16.msra.mxu0 0
        %1836 = vmatprep.subr.bf16.mxu0 0
        %1837 = vmatpush1.bf16.msra.mxu0 0
        %1838 = vmatprep.subr.bf16.mxu0 0
        %1839 = vmatpush1.bf16.msra.mxu0 0
        %1840 = vmatprep.subr.bf16.mxu0 0
        %1841 = vmatpush1.bf16.msra.mxu0 0
        %1842 = vmatprep.subr.bf16.mxu0 0
        %1843 = vmatpush1.bf16.msra.mxu0 %v1824
        %1844 = vmatprep.subr.bf16.mxu0 0
        %1845 = vmatpush1.bf16.msra.mxu0 %v1823
        %1846 = vmatprep.subr.bf16.mxu0 0
        %1847 = vmatpush2.bf16.msra.mxu0 0
        %1848 = vmatprep.subr.bf16.mxu0 0
        %1849 = vmatpush2.bf16.msra.mxu0 0
        %1850 = vmatprep.subr.bf16.mxu0 0
        %1851 = vmatpush2.bf16.msra.mxu0 0
        %1852 = vmatprep.subr.bf16.mxu0 0
        %1853 = vmatpush2.bf16.msra.mxu0 0
        %1854 = vmatprep.subr.bf16.mxu0 0
        %1855 = vmatpush2.bf16.msra.mxu0 0
        %1856 = vmatprep.subr.bf16.mxu0 0
        %1857 = vmatpush2.bf16.msra.mxu0 0
        %1858 = vmatprep.subr.bf16.mxu0 0
        %1859 = vmatpush2.bf16.msra.mxu0 0
        %1860 = vmatprep.subr.bf16.mxu0 0
        %1861 = vmatpush2.bf16.msra.mxu0 0
        %1862 = vmatprep.mubr.bf16.mxu0 0
        %1863 = vmatmul.mubr.bf16.gmra.mxu0 %v1828
        %v1864 = vpop.f32.mrf.mxu0
        %v1865 = vadd.f32 %v1814, %v1864
        %v1866 = vpop.f32.mrf.mxu0
        %v1867 = vpop.f32.mrf.mxu0
        %v1868 = vpop.f32.mrf.mxu0
        %1869 = vdwg.mxu0
        %v1870 = vadd.f32 %v1865, %v1280
        %v1871 = vsel %vm455, %v1870, 0.0
        %1872 = vadd.xlane.f32.xlu0 %v1871
        %v1873 = vpop.xlane.xlu0 %1872
        %v1874 = vmul.f32 %v1873, %v459
        %v1875 = vsub.f32 %v1870, %v1874
        %v1876 = vmul.f32 %v1875, %v1875
        %v1877 = vsel %vm455, %v1876, 0.0
        %1878 = vadd.xlane.f32.xlu0 %v1877
        %v1879 = vpop.xlane.xlu0 %1878
        %v1880 = vmul.f32 %v1879, %v459
        %v1881 = vadd.f32 %v1880, 1e-12
        %v1882 = vrsqrt.pop %v1881
        %v1883 = vmul.f32 %v1875, %v1882
        %v1884 = vlaneseq
        %v1885 = vshrl.u32 %v1884, 7
        %v1886 = vsub.s32 1, %v1885
        %v1887 = vrot.slane %v452, %v1886
        %v1888 = vmul.f32 %v1883, %v1887
        %v1889 = vlaneseq
        %v1890 = vshrl.u32 %v1889, 7
        %v1891 = vsub.s32 2, %v1890
        %v1892 = vrot.slane %v452, %v1891
        %v1893 = vadd.f32 %v1888, %v1892
        %v1894 = vpack.c.bf16 %v1893, %v1893
        %s1895 = scalar_lea.vmem %s7, 16
        %v1896 = vld [vmem:[%s1895] sm:$0xf]
        %v1897 = vld [vmem:[%s1895 + $0x4] sm:$0xf]
        %v1898 = vld [vmem:[%s1895 + $0x8] sm:$0xf]
        %v1899 = vld [vmem:[%s1895 + $0xc] sm:$0xf]
        %s1900 = scalar_lea.vmem %s8, 1
        %v1901 = vld [vmem:[%s1900] sm:$0x1]
        %v1903 = vlaneseq
        %v1904 = vshrl.u32 %v1903, 7
        %v1905 = vsub.s32 0, %v1904
        %v1906 = vrot.slane %v1901, %v1905
        %v1912 = vunpack.c.l.b16 %v1896
        %v1913 = vunpack.c.l.b16 %v1897
        %v1914 = vunpack.c.l.b16 %v1898
        %v1915 = vunpack.c.l.b16 %v1899
        %v1916 = vpack.c.b16 %v1913, %v1912
        %v1917 = vpack.c.b16 %v1915, %v1914
        %v1921 = vsel %vm455, %v1894, 0
        %1923 = vmatprep.subr.bf16.mxu0 0
        %1924 = vmatpush1.bf16.msra.mxu0 0
        %1925 = vmatprep.subr.bf16.mxu0 0
        %1926 = vmatpush1.bf16.msra.mxu0 0
        %1927 = vmatprep.subr.bf16.mxu0 0
        %1928 = vmatpush1.bf16.msra.mxu0 0
        %1929 = vmatprep.subr.bf16.mxu0 0
        %1930 = vmatpush1.bf16.msra.mxu0 0
        %1931 = vmatprep.subr.bf16.mxu0 0
        %1932 = vmatpush1.bf16.msra.mxu0 0
        %1933 = vmatprep.subr.bf16.mxu0 0
        %1934 = vmatpush1.bf16.msra.mxu0 0
        %1935 = vmatprep.subr.bf16.mxu0 0
        %1936 = vmatpush1.bf16.msra.mxu0 %v1917
        %1937 = vmatprep.subr.bf16.mxu0 0
        %1938 = vmatpush1.bf16.msra.mxu0 %v1916
        %1939 = vmatprep.subr.bf16.mxu0 0
        %1940 = vmatpush2.bf16.msra.mxu0 0
        %1941 = vmatprep.subr.bf16.mxu0 0
        %1942 = vmatpush2.bf16.msra.mxu0 0
        %1943 = vmatprep.subr.bf16.mxu0 0
        %1944 = vmatpush2.bf16.msra.mxu0 0
        %1945 = vmatprep.subr.bf16.mxu0 0
        %1946 = vmatpush2.bf16.msra.mxu0 0
        %1947 = vmatprep.subr.bf16.mxu0 0
        %1948 = vmatpush2.bf16.msra.mxu0 0
        %1949 = vmatprep.subr.bf16.mxu0 0
        %1950 = vmatpush2.bf16.msra.mxu0 0
        %1951 = vmatprep.subr.bf16.mxu0 0
        %1952 = vmatpush2.bf16.msra.mxu0 0
        %1953 = vmatprep.subr.bf16.mxu0 0
        %1954 = vmatpush2.bf16.msra.mxu0 0
        %1955 = vmatprep.mubr.bf16.mxu0 0
        %1956 = vmatmul.mubr.bf16.gmra.mxu0 %v1921
        %v1957 = vpop.f32.mrf.mxu0
        %v1958 = vadd.f32 %v1906, %v1957
        %v1959 = vpop.f32.mrf.mxu0
        %v1960 = vpop.f32.mrf.mxu0
        %v1961 = vpop.f32.mrf.mxu0
        %1962 = vdwg.mxu0
        %v1963 = vmul.f32 %v1958, 0.5
        %v1964 = vmul.f32 %v1958, 0.044715
        %v1965 = vmul.f32 %v1964, %v1958
        %v1966 = vmul.f32 %v1965, %v1958
        %v1967 = vadd.f32 %v1958, %v1966
        %v1968 = vmul.f32 %v1967, 0.7978846
        %v1969 = vtanh.pop %v1968
        %v1970 = vadd.f32 %v1969, 1.0
        %v1971 = vmul.f32 %v1963, %v1970
        %v1972 = vpack.c.bf16 %v1971, %v1971
        %s1973 = scalar_lea.vmem %s9, 32
        %v1974 = vld [vmem:[%s1973] sm:$0xf]
        %v1975 = vld [vmem:[%s1973 + $0x4] sm:$0xf]
        %v1976 = vld [vmem:[%s1973 + $0x8] sm:$0xf]
        %v1977 = vld [vmem:[%s1973 + $0xc] sm:$0xf]
        %v1978 = vld [vmem:[%s1973 + $0x10] sm:$0xf]
        %v1979 = vld [vmem:[%s1973 + $0x14] sm:$0xf]
        %v1980 = vld [vmem:[%s1973 + $0x18] sm:$0xf]
        %v1981 = vld [vmem:[%s1973 + $0x1c] sm:$0xf]
        %v1982 = vlaneseq
        %v1983 = vshrl.u32 %v1982, 7
        %v1984 = vsub.s32 3, %v1983
        %v1985 = vrot.slane %v452, %v1984
        %v1994 = vunpack.c.l.b16 %v1974
        %v1995 = vunpack.c.l.b16 %v1975
        %v1996 = vunpack.c.l.b16 %v1976
        %v1997 = vunpack.c.l.b16 %v1977
        %v1998 = vunpack.c.l.b16 %v1978
        %v1999 = vunpack.c.l.b16 %v1979
        %v2000 = vunpack.c.l.b16 %v1980
        %v2001 = vunpack.c.l.b16 %v1981
        %v2002 = vpack.c.b16 %v1995, %v1994
        %v2003 = vpack.c.b16 %v1997, %v1996
        %v2004 = vpack.c.b16 %v1999, %v1998
        %v2005 = vpack.c.b16 %v2001, %v2000
        %v2011 = vsel %vm1213, %v1972, 0
        %2013 = vmatprep.subr.bf16.mxu0 0
        %2014 = vmatpush1.bf16.msra.mxu0 0
        %2015 = vmatprep.subr.bf16.mxu0 0
        %2016 = vmatpush1.bf16.msra.mxu0 0
        %2017 = vmatprep.subr.bf16.mxu0 0
        %2018 = vmatpush1.bf16.msra.mxu0 0
        %2019 = vmatprep.subr.bf16.mxu0 0
        %2020 = vmatpush1.bf16.msra.mxu0 0
        %2021 = vmatprep.subr.bf16.mxu0 0
        %2022 = vmatpush1.bf16.msra.mxu0 %v2005
        %2023 = vmatprep.subr.bf16.mxu0 0
        %2024 = vmatpush1.bf16.msra.mxu0 %v2004
        %2025 = vmatprep.subr.bf16.mxu0 0
        %2026 = vmatpush1.bf16.msra.mxu0 %v2003
        %2027 = vmatprep.subr.bf16.mxu0 0
        %2028 = vmatpush1.bf16.msra.mxu0 %v2002
        %2029 = vmatprep.subr.bf16.mxu0 0
        %2030 = vmatpush2.bf16.msra.mxu0 0
        %2031 = vmatprep.subr.bf16.mxu0 0
        %2032 = vmatpush2.bf16.msra.mxu0 0
        %2033 = vmatprep.subr.bf16.mxu0 0
        %2034 = vmatpush2.bf16.msra.mxu0 0
        %2035 = vmatprep.subr.bf16.mxu0 0
        %2036 = vmatpush2.bf16.msra.mxu0 0
        %2037 = vmatprep.subr.bf16.mxu0 0
        %2038 = vmatpush2.bf16.msra.mxu0 0
        %2039 = vmatprep.subr.bf16.mxu0 0
        %2040 = vmatpush2.bf16.msra.mxu0 0
        %2041 = vmatprep.subr.bf16.mxu0 0
        %2042 = vmatpush2.bf16.msra.mxu0 0
        %2043 = vmatprep.subr.bf16.mxu0 0
        %2044 = vmatpush2.bf16.msra.mxu0 0
        %2045 = vmatprep.mubr.bf16.mxu0 0
        %2046 = vmatmul.mubr.bf16.gmra.mxu0 %v2011
        %v2047 = vpop.f32.mrf.mxu0
        %v2048 = vadd.f32 %v1985, %v2047
        %v2049 = vpop.f32.mrf.mxu0
        %v2050 = vpop.f32.mrf.mxu0
        %v2051 = vpop.f32.mrf.mxu0
        %2052 = vdwg.mxu0
        %v2053 = vadd.f32 %v2048, %v1893
        %v2054 = vsel %vm455, %v2053, 0.0
        %2055 = vadd.xlane.f32.xlu0 %v2054
        %v2056 = vpop.xlane.xlu0 %2055
        %v2057 = vmul.f32 %v2056, %v459
        %v2058 = vsub.f32 %v2053, %v2057
        %v2059 = vmul.f32 %v2058, %v2058
        %v2060 = vsel %vm455, %v2059, 0.0
        %2061 = vadd.xlane.f32.xlu0 %v2060
        %v2062 = vpop.xlane.xlu0 %2061
        %v2063 = vmul.f32 %v2062, %v459
        %v2064 = vadd.f32 %v2063, 1e-12
        %v2065 = vrsqrt.pop %v2064
        %v2066 = vmul.f32 %v2058, %v2065
        %v2067 = vlaneseq
        %v2068 = vshrl.u32 %v2067, 7
        %v2069 = vsub.s32 4, %v2068
        %v2070 = vrot.slane %v452, %v2069
        %v2071 = vmul.f32 %v2066, %v2070
        %v2072 = vlaneseq
        %v2073 = vshrl.u32 %v2072, 7
        %v2074 = vsub.s32 5, %v2073
        %v2075 = vrot.slane %v452, %v2074
        %v2076 = vadd.f32 %v2071, %v2075
        %v2077 = vpack.c.bf16 %v2076, %v2076
        %v2078 = vld [vmem:[%s10] sm:$0xf]
        %v2079 = vld [vmem:[%s10 + $0x4] sm:$0xf]
        %v2080 = vld [vmem:[%s10 + $0x8] sm:$0xf]
        %v2081 = vld [vmem:[%s10 + $0xc] sm:$0xf]
        %v2082 = vlaneseq
        %v2083 = vshrl.u32 %v2082, 7
        %v2084 = vsub.s32 2, %v2083
        %v2085 = vrot.slane %v450, %v2084
        %v2090 = vunpack.c.l.b16 %v2078
        %v2091 = vunpack.c.l.b16 %v2079
        %v2092 = vunpack.c.l.b16 %v2080
        %v2093 = vunpack.c.l.b16 %v2081
        %v2094 = vpack.c.b16 %v2091, %v2090
        %v2095 = vpack.c.b16 %v2093, %v2092
        %v2099 = vsel %vm455, %v2077, 0
        %2101 = vmatprep.subr.bf16.mxu0 0
        %2102 = vmatpush1.bf16.msra.mxu0 0
        %2103 = vmatprep.subr.bf16.mxu0 0
        %2104 = vmatpush1.bf16.msra.mxu0 0
        %2105 = vmatprep.subr.bf16.mxu0 0
        %2106 = vmatpush1.bf16.msra.mxu0 0
        %2107 = vmatprep.subr.bf16.mxu0 0
        %2108 = vmatpush1.bf16.msra.mxu0 0
        %2109 = vmatprep.subr.bf16.mxu0 0
        %2110 = vmatpush1.bf16.msra.mxu0 0
        %2111 = vmatprep.subr.bf16.mxu0 0
        %2112 = vmatpush1.bf16.msra.mxu0 0
        %2113 = vmatprep.subr.bf16.mxu0 0
        %2114 = vmatpush1.bf16.msra.mxu0 %v2095
        %2115 = vmatprep.subr.bf16.mxu0 0
        %2116 = vmatpush1.bf16.msra.mxu0 %v2094
        %2117 = vmatprep.subr.bf16.mxu0 0
        %2118 = vmatpush2.bf16.msra.mxu0 0
        %2119 = vmatprep.subr.bf16.mxu0 0
        %2120 = vmatpush2.bf16.msra.mxu0 0
        %2121 = vmatprep.subr.bf16.mxu0 0
        %2122 = vmatpush2.bf16.msra.mxu0 0
        %2123 = vmatprep.subr.bf16.mxu0 0
        %2124 = vmatpush2.bf16.msra.mxu0 0
        %2125 = vmatprep.subr.bf16.mxu0 0
        %2126 = vmatpush2.bf16.msra.mxu0 0
        %2127 = vmatprep.subr.bf16.mxu0 0
        %2128 = vmatpush2.bf16.msra.mxu0 0
        %2129 = vmatprep.subr.bf16.mxu0 0
        %2130 = vmatpush2.bf16.msra.mxu0 0
        %2131 = vmatprep.subr.bf16.mxu0 0
        %2132 = vmatpush2.bf16.msra.mxu0 0
        %2133 = vmatprep.mubr.bf16.mxu0 0
        %2134 = vmatmul.mubr.bf16.gmra.mxu0 %v2099
        %v2135 = vpop.f32.mrf.mxu0
        %v2136 = vadd.f32 %v2085, %v2135
        %v2137 = vpop.f32.mrf.mxu0
        %v2138 = vpop.f32.mrf.mxu0
        %v2139 = vpop.f32.mrf.mxu0
        %2140 = vdwg.mxu0
        %v2141 = vtanh.pop %v2136
        %v2142 = vpack.c.bf16 %v2141, %v2141
        %v2143 = vld [vmem:[%s11] sm:$0xf]
        %v2144 = vld [vmem:[%s11 + $0x4] sm:$0xf]
        %v2145 = vld [vmem:[%s11 + $0x8] sm:$0xf]
        %v2146 = vld [vmem:[%s11 + $0xc] sm:$0xf]
        %v2147 = vld [vmem:[%s12] sm:$0x1]
        %v2149 = vlaneseq
        %v2150 = vshrl.u32 %v2149, 7
        %v2151 = vsub.s32 0, %v2150
        %v2152 = vrot.slane %v2147, %v2151
        %v2158 = vunpack.c.l.b16 %v2143
        %v2159 = vunpack.c.l.b16 %v2144
        %v2160 = vunpack.c.l.b16 %v2145
        %v2161 = vunpack.c.l.b16 %v2146
        %v2162 = vpack.c.b16 %v2159, %v2158
        %v2163 = vpack.c.b16 %v2161, %v2160
        %v2167 = vsel %vm455, %v2142, 0
        %2169 = vmatprep.subr.bf16.mxu0 0
        %2170 = vmatpush1.bf16.msra.mxu0 0
        %2171 = vmatprep.subr.bf16.mxu0 0
        %2172 = vmatpush1.bf16.msra.mxu0 0
        %2173 = vmatprep.subr.bf16.mxu0 0
        %2174 = vmatpush1.bf16.msra.mxu0 0
        %2175 = vmatprep.subr.bf16.mxu0 0
        %2176 = vmatpush1.bf16.msra.mxu0 0
        %2177 = vmatprep.subr.bf16.mxu0 0
        %2178 = vmatpush1.bf16.msra.mxu0 0
        %2179 = vmatprep.subr.bf16.mxu0 0
        %2180 = vmatpush1.bf16.msra.mxu0 0
        %2181 = vmatprep.subr.bf16.mxu0 0
        %2182 = vmatpush1.bf16.msra.mxu0 %v2163
        %2183 = vmatprep.subr.bf16.mxu0 0
        %2184 = vmatpush1.bf16.msra.mxu0 %v2162
        %2185 = vmatprep.subr.bf16.mxu0 0
        %2186 = vmatpush2.bf16.msra.mxu0 0
        %2187 = vmatprep.subr.bf16.mxu0 0
        %2188 = vmatpush2.bf16.msra.mxu0 0
        %2189 = vmatprep.subr.bf16.mxu0 0
        %2190 = vmatpush2.bf16.msra.mxu0 0
        %2191 = vmatprep.subr.bf16.mxu0 0
        %2192 = vmatpush2.bf16.msra.mxu0 0
        %2193 = vmatprep.subr.bf16.mxu0 0
        %2194 = vmatpush2.bf16.msra.mxu0 0
        %2195 = vmatprep.subr.bf16.mxu0 0
        %2196 = vmatpush2.bf16.msra.mxu0 0
        %2197 = vmatprep.subr.bf16.mxu0 0
        %2198 = vmatpush2.bf16.msra.mxu0 0
        %2199 = vmatprep.subr.bf16.mxu0 0
        %2200 = vmatpush2.bf16.msra.mxu0 0
        %2201 = vmatprep.mubr.bf16.mxu0 0
        %2202 = vmatmul.mubr.bf16.gmra.mxu0 %v2167
        %v2203 = vpop.f32.mrf.mxu0
        %v2204 = vadd.f32 %v2152, %v2203
        %v2205 = vpop.f32.mrf.mxu0
        %v2206 = vpop.f32.mrf.mxu0
        %v2207 = vpop.f32.mrf.mxu0
        %2208 = vdwg.mxu0
        %2209 = vst [vmem:[%s441] sm:$0x1] %v2204
        %s2210 = sand.u32 %s318, 1
        %s2211 = scalar_lea.sflag [#allocation3], %s2210
        %s2212 = sand.u32 %s318, 1
        %s2213 = scalar_lea.vmem [#allocation2], %s2212
        // Predicated region
        $region73: #{transformer_model_forward.1} parent=71 // pred_check
          %p2214 = pneg %p328
        $region74: #{transformer_model_forward.1} parent=71 // pred_check_branch
          %2216 = sbr.rel (%p2214) target = $region76
        $region75: #{transformer_model_forward.1} parent=71 // pred_region
          %s2218 = ssub.s32 16, 16
          %2219 = vsyncadd %s2211, %s2218
          %s2220 = smul.addr %s27, 16
          %s2221 = scalar_lea.hbm %s13, %s2220
          %s2223 = sshll.u32 %s2213, 4
          %s2224 = int_to_ptr.vmem [resolvable:$true] %s2223
          %2226 = dma.vmem_to_hbm [thread:$0]  %s2224, 16, %s2221, %s2211
        $region76: #{transformer_model_forward.1} parent=71 // pred_fallthru
          _
      $region72: #{transformer_model_forward.1} parent=5 // pred_fallthru
        _
      %p2227 = scmp.le.s32.totalorder 2, %s22
      // Predicated region
      $region77: #{transformer_model_forward.1} parent=5 // pred_check
        %p2228 = pneg %p2227
      $region78: #{transformer_model_forward.1} parent=5 // pred_check_branch
        %2230 = sbr.rel (%p2228) target = $region80
      $region79: #{transformer_model_forward.1} parent=5 // pred_region
        %s2231 = ssub.s32 %s22, 2
        // Predicated region
        $region81: #{transformer_model_forward.1} parent=79 // pred_check
          %p2232 = pneg %p334
        $region82: #{transformer_model_forward.1} parent=79 // pred_check_branch
          %2234 = sbr.rel (%p2232) target = $region84
        $region83: #{transformer_model_forward.1} parent=79 // pred_region
          %s2235 = sand.u32 %s319, 1
          %s2236 = scalar_lea.sflag [#allocation3], %s2235
          %s2237 = sand.u32 %s319, 1
          %s2238 = scalar_lea.vmem [#allocation2], %s2237
          %2239 = dma.done %s2236, 16
        $region84: #{transformer_model_forward.1} parent=79 // pred_fallthru
          _
      $region80: #{transformer_model_forward.1} parent=5 // pred_fallthru
        _
    $region6: #{transformer_model_forward.1} parent=1 // loop_footer
      %s26 = sadd.s32 1, %s22
    $region7: #{transformer_model_forward.1} parent=1 // loop_footer_branch
      %21 = sbr.rel target = $region3
    $region8: #{transformer_model_forward.1} parent=1 // loop_exit
      _
    %2240 = vsyncpa [#allocation3], 1
    %s2241 = scalar_lea.sflag [#allocation3], 1
    %2242 = vsyncpa %s2241, 1

</llo_original>
